<compile_context>
chip_gen: v7x
topology: tpu7x:2x2x1
jax: 0.10.0
libtpu: 0.0.40
codegen_flags: <defaults>
</compile_context>

<pallas_src>
import numpy as np
import jax
import jax.numpy as jnp
from jax.experimental import pallas as pl
from jax.experimental.pallas import tpu as pltpu

_C = 4      # input channels (grid observation planes)
_HID = 64   # hidden size of the grid columns


# ----------------------------------------------------------------------------
# Static packing layout: one bf16 weight buffer (rows x 128), one f32 bias
# buffer (16 x 128).  Row offsets are 16-aligned (bf16 sublane tile).
# ----------------------------------------------------------------------------
def _build_layout(c=_C, hid=_HID):
    ent = [
        # key, K (= 2*W_in*C_in for 2x2 convs / fan-in for linears), N
        ('c1a', 2 * 7 * c, 6 * 16), ('c1b', 2 * 7 * c, 6 * 16),
        ('c2a', 2 * 3 * 16, 2 * 32), ('c2b', 2 * 3 * 16, 2 * 32),
        ('u1', 2 * 3 * 8, 2 * 32),
        ('c3a', 2 * 2 * 32, 64), ('c3b', 2 * 2 * 32, 64),
        ('u2', 2 * 2 * 16, 64),
        ('v1', 3 * 16, 3 * 8), ('v2', 2 * 32, 2 * 16), ('v3', 64, 32),
        ('u3', 32, hid),
        ('f1', hid, 64), ('f2', 64, 64), ('q1', hid, 64), ('q2', 64, 1),
    ]
    w_off, r = {}, 0
    for k, K, N in ent:
        w_off[k] = (r, K, N)
        r += -(-K // 16) * 16                 # keep offsets 16-row aligned
    b_row = {k: (i, N) for i, (k, K, N) in enumerate(ent)}
    return dict(w_off=w_off, b_row=b_row, w_rows=r, n_bias=len(ent),
                xcols=7 * c)


_LAYOUT = _build_layout()


# ----------------------------------------------------------------------------
# Parameters in "natural" layout (conv: (kh,kw,Cin,Cout), linear: (in,out)).
# ----------------------------------------------------------------------------
def init_params(key, num_inputs=_C, hidden=_HID):
    keys = iter(jax.random.split(key, 40))
    nk = lambda: next(keys)

    def w(shape, fan_in):
        return jax.random.normal(nk(), shape, jnp.float32) / np.sqrt(fan_in)

    conv_w = lambda cin, cout: w((2, 2, cin, cout), 4 * cin)
    lin_w = lambda fi, fo: w((fi, fo), fi)
    b = lambda n: 0.1 * jax.random.normal(nk(), (n,), jnp.float32)

    def column():
        return dict(conv1_w=conv_w(num_inputs, 16), conv1_b=b(16),
                    conv2_w=conv_w(16, 32), conv2_b=b(32),
                    conv3_w=conv_w(32, 64), conv3_b=b(64),
                    fc1_w=lin_w(hidden, 64), fc1_b=b(64),
                    fc2_w=lin_w(64, 64), fc2_b=b(64))

    lateral = dict(alpha=jnp.full((3,), 0.01, jnp.float32),     # ScaleLayer(0.01)
                   V1_w=lin_w(16, 8), V1_b=b(8),                # Conv2d(16, 8, 1)
                   V2_w=lin_w(32, 16), V2_b=b(16),              # Conv2d(32, 16, 1)
                   V3_w=lin_w(64, 32), V3_b=b(32),              # Conv2d(64, 32, 1)
                   U1_w=conv_w(8, 32), U1_b=b(32),              # Conv2d(8, 32, 2)
                   U2_w=conv_w(16, 64), U2_b=b(64),             # Conv2d(16, 64, 2)
                   U3_w=lin_w(32, hidden), U3_b=b(hidden))      # Linear(32, hid)
    critic = dict(c1_w=lin_w(hidden, 64), c1_b=b(64),           # Linear->Tanh->Linear(1)
                  c2_w=lin_w(64, 1), c2_b=b(1))
    return dict(col0=column(), col1=column(), lateral=lateral, critic=critic)


# ----------------------------------------------------------------------------
# Host-side packing: Toeplitz / block-diagonal expansion + single flat buffers.
# ----------------------------------------------------------------------------
def pack_params(params, layout=_LAYOUT):
    c0, c1 = params['col0'], params['col1']
    lat, cr = params['lateral'], params['critic']

    def toep(w, win, perm_pool=False):
        # 2x2 stride-1 conv folded into a column-Toeplitz matrix, the two
        # di-blocks stacked vertically (matches the in-kernel lane concat).
        w = np.asarray(w)
        kh, kw, cin, cout = w.shape
        wout = win - kw + 1
        t = np.zeros((kh, win * cin, wout * cout), np.float32)
        for di in range(kh):
            for wo in range(wout):
                for dj in range(kw):
                    wi = wo + dj
                    t[di, wi * cin:(wi + 1) * cin,
                      wo * cout:(wo + 1) * cout] = w[di, dj]
        t = t.reshape(kh * win * cin, wout * cout)
        if perm_pool:   # conv1 only: group even / odd output columns for the pool
            order = np.concatenate([np.arange(wo * cout, (wo + 1) * cout)
                                    for wo in (0, 2, 4, 1, 3, 5)])
            t = t[:, order]
        return t

    def bdiag(v, w):    # 1x1 conv on a canvas == block-diagonal matmul
        v = np.asarray(v)
        cin, cout = v.shape
        t = np.zeros((w * cin, w * cout), np.float32)
        for k in range(w):
            t[k * cin:(k + 1) * cin, k * cout:(k + 1) * cout] = v
        return t

    mats = {
        'c1a': toep(c0['conv1_w'], 7, perm_pool=True),
        'c1b': toep(c1['conv1_w'], 7, perm_pool=True),
        'c2a': toep(c0['conv2_w'], 3), 'c2b': toep(c1['conv2_w'], 3),
        'u1': toep(lat['U1_w'], 3),
        'c3a': toep(c0['conv3_w'], 2), 'c3b': toep(c1['conv3_w'], 2),
        'u2': toep(lat['U2_w'], 2),
        'v1': bdiag(lat['V1_w'], 3), 'v2': bdiag(lat['V2_w'], 2),
        'v3': np.asarray(lat['V3_w']), 'u3': np.asarray(lat['U3_w']),
        'f1': np.asarray(c1['fc1_w']), 'f2': np.asarray(c1['fc2_w']),
        'q1': np.asarray(cr['c1_w']), 'q2': np.asarray(cr['c2_w']),
    }
    biases = {
        'c1a': np.tile(np.asarray(c0['conv1_b']), 6),
        'c1b': np.tile(np.asarray(c1['conv1_b']), 6),
        'c2a': np.tile(np.asarray(c0['conv2_b']), 2),
        'c2b': np.tile(np.asarray(c1['conv2_b']), 2),
        'u1': np.tile(np.asarray(lat['U1_b']), 2),
        'c3a': np.asarray(c0['conv3_b']), 'c3b': np.asarray(c1['conv3_b']),
        'u2': np.asarray(lat['U2_b']),
        'v1': np.tile(np.asarray(lat['V1_b']), 3),
        'v2': np.tile(np.asarray(lat['V2_b']), 2),
        'v3': np.asarray(lat['V3_b']), 'u3': np.asarray(lat['U3_b']),
        'f1': np.asarray(c1['fc1_b']), 'f2': np.asarray(c1['fc2_b']),
        'q1': np.asarray(cr['c1_b']), 'q2': np.asarray(cr['c2_b']),
    }

    wbuf = np.zeros((layout['w_rows'], 128), np.float32)
    for k, (r0, K, N) in layout['w_off'].items():
        assert mats[k].shape == (K, N), (k, mats[k].shape, (K, N))
        wbuf[r0:r0 + K, :N] = mats[k]
    bbuf = np.zeros((layout['n_bias'], 128), np.float32)
    for k, (row, N) in layout['b_row'].items():
        bbuf[row, :N] = biases[k]

    return dict(w=jnp.asarray(wbuf, jnp.bfloat16),
                b=jnp.asarray(bbuf, jnp.float32),
                alpha=jnp.asarray(lat['alpha'], jnp.float32))


# ----------------------------------------------------------------------------
# The single fused kernel.
# Canvas heights per sample: level0 = 8 (valid 7/6), level1 = 4 (valid 3/2),
# level2 = 1.  Row-shifted / strided reads of VMEM scratch canvases replace
# all gather matmuls; each conv is one bf16 MXU matmul.
# ----------------------------------------------------------------------------
def _make_kernel(B, L):
    W_OFF, B_ROW = L['w_off'], L['b_row']
    f32, bf16 = jnp.float32, jnp.bfloat16

    def kernel(al_ref, x_ref, w_ref, b_ref, out_ref,
               y1a, y1b, h0a, h0b, v1c, h1a, h1b, v2c):

        def matw(key):
            r0, K, N = W_OFF[key]
            return w_ref[r0:r0 + K, 0:N]

        def bias(key):
            r, N = B_ROW[key]
            return b_ref[r:r + 1, 0:N]

        def mm(a, w):
            return jnp.dot(a.astype(bf16), w, preferred_element_type=f32)

        def relu(t):
            return jnp.maximum(t, 0.0)

        def conv(src_ref, key, n_out, rstride=1):
            # one im2col matmul: the two row-shifted reads concatenated on lanes
            if rstride == 1:
                p0 = src_ref[0:n_out, :]
                p1 = src_ref[1:1 + n_out, :]
            else:
                p0 = src_ref[pl.ds(0, n_out, stride=rstride), :]
                p1 = src_ref[pl.ds(1, n_out, stride=rstride), :]
            p = jnp.concatenate([p0, p1], axis=1)
            return mm(p, matw(key)) + bias(key)

        # zero the shift-padding rows of the padded canvases (deterministic).
        h0a[B * 4:, :] = jnp.zeros((h0a.shape[0] - B * 4, h0a.shape[1]), f32)
        h0b[B * 4:, :] = jnp.zeros((h0b.shape[0] - B * 4, h0b.shape[1]), f32)
        v1c[B * 4:, :] = jnp.zeros((v1c.shape[0] - B * 4, v1c.shape[1]), f32)

        a0, a1, a2 = al_ref[0], al_ref[1], al_ref[2]

        # ---- layer 0: relu(conv1) -> maxpool 2x2 (both columns see raw x) ----
        y1a[...] = relu(conv(x_ref, 'c1a', B * 8))      # (B*8, 96)  cols even|odd
        y1b[...] = relu(conv(x_ref, 'c1b', B * 8))

        def pool(src_ref):                               # VPU only
            r0 = src_ref[pl.ds(0, B * 4, stride=2), :]
            r1 = src_ref[pl.ds(1, B * 4, stride=2), :]
            m = jnp.maximum(r0, r1)
            h = m.shape[1] // 2
            return jnp.maximum(m[:, :h], m[:, h:])       # (B*4, 48)

        h0a[0:B * 4, :] = pool(y1a)
        h0b[0:B * 4, :] = pool(y1b)

        # ---- layer 1: conv2 + lateral (alpha -> V1 1x1 -> U1 2x2) ------------
        h1a[...] = relu(conv(h0a, 'c2a', B * 4))                     # (B*4, 64)
        cur = relu(conv(h0b, 'c2b', B * 4))
        v1c[0:B * 4, :] = relu(mm(relu(h0a[0:B * 4, :] * a0), matw('v1'))
                               + bias('v1'))
        h1b[...] = relu(cur + conv(v1c, 'u1', B * 4))    # double ReLU as in ref

        # ---- layer 2: conv3 + lateral (alpha -> V2 1x1 -> U2 2x2) ------------
        h2a = relu(conv(h1a, 'c3a', B, rstride=4))                   # (B, 64)
        cur = relu(conv(h1b, 'c3b', B, rstride=4))
        v2c[...] = relu(mm(relu(h1a[...] * a1), matw('v2')) + bias('v2'))
        h2b = relu(cur + conv(v2c, 'u2', B, rstride=4))

        # ---- layer 3: fc (Linear->Tanh->Linear) + lateral (V3 -> U3) ---------
        # (column 0's layer-3 fc output is dead code in the reference forward)
        cur = mm(jnp.tanh(mm(h2b, matw('f1')) + bias('f1')), matw('f2')) \
            + bias('f2')
        vah = relu(mm(relu(h2a * a2), matw('v3')) + bias('v3'))
        feat = relu(cur + mm(vah, matw('u3')) + bias('u3'))          # (B, 64)

        # ---- critic head: Linear -> Tanh -> Linear(1) ------------------------
        val = mm(jnp.tanh(mm(feat, matw('q1')) + bias('q1')), matw('q2')) \
            + bias('q2')                                             # (B, 1)

        # single lane-dense output: [:, :64] = feat, [:, 64:] = value broadcast
        out_ref[...] = jnp.concatenate(
            [feat, jnp.broadcast_to(val, (B, feat.shape[1]))], axis=1)

    return kernel


# ----------------------------------------------------------------------------
# Forward wrapper: one pallas_call for the whole network.
# ----------------------------------------------------------------------------
def pnn_forward(packed, x, rnn_hxs, masks):
    """PNNConvBase.forward (grid=True, 2 columns, recurrent=False)."""
    del masks  # only used by the (unimplemented) recurrent GRU branch
    B, C, H, W = x.shape
    assert (H, W) == (7, 7) and W * C == _LAYOUT['xcols']

    # NCHW -> (b,h) x (w,c) canvas; pad h to 8 per sample + 8 tail pad rows.
    xh = jnp.transpose(x, (0, 2, 3, 1)).reshape(B, H, W * C)
    xc = jnp.pad(xh, ((0, 0), (0, 1), (0, 0))).reshape(B * 8, W * C)
    xc = jnp.pad(xc, ((0, 8), (0, 0)))

    kernel = _make_kernel(B, _LAYOUT)

    mrows = dict(c1a=8 * B, c1b=8 * B, c2a=4 * B, c2b=4 * B, u1=4 * B,
                 v1=4 * B, v2=4 * B, c3a=B, c3b=B, u2=B,
                 v3=B, u3=B, f1=B, f2=B, q1=B, q2=B)
    flops = int(sum(2 * mrows[k] * K * N
                    for k, (_, K, N) in _LAYOUT['w_off'].items()))
    bytes_accessed = int(packed['w'].size * 2 + packed['b'].size * 4
                         + xc.size * 4 + B * 128 * 4 + 3 * 4)

    out = pl.pallas_call(
        kernel,
        out_shape=jax.ShapeDtypeStruct((B, 128), jnp.float32),
        in_specs=[pl.BlockSpec(memory_space=pltpu.MemorySpace.SMEM),   # alphas
                  pl.BlockSpec(memory_space=pltpu.MemorySpace.VMEM),   # x canvas
                  pl.BlockSpec(memory_space=pltpu.MemorySpace.VMEM),   # weights
                  pl.BlockSpec(memory_space=pltpu.MemorySpace.VMEM)],  # biases
        out_specs=pl.BlockSpec(memory_space=pltpu.MemorySpace.VMEM),
        scratch_shapes=[
            pltpu.VMEM((B * 8, 96), jnp.float32),       # y1a (conv1 col0)
            pltpu.VMEM((B * 8, 96), jnp.float32),       # y1b (conv1 col1)
            pltpu.VMEM((B * 4 + 8, 48), jnp.float32),   # h0a (pool col0, +pad)
            pltpu.VMEM((B * 4 + 8, 48), jnp.float32),   # h0b (pool col1, +pad)
            pltpu.VMEM((B * 4 + 8, 24), jnp.float32),   # V1 output (+pad)
            pltpu.VMEM((B * 4, 64), jnp.float32),       # h1a
            pltpu.VMEM((B * 4, 64), jnp.float32),       # h1b
            pltpu.VMEM((B * 4, 32), jnp.float32),       # V2 output
        ],
        cost_estimate=pl.CostEstimate(flops=flops,
                                      transcendentals=3 * B * 64,
                                      bytes_accessed=bytes_accessed),
    )(packed['alpha'], xc, packed['w'], packed['b'])

    feat = out[:, :_HID]
    value = out[:, _HID:_HID + 1]
    return value, feat, rnn_hxs


# ----------------------------------------------------------------------------
# Pure-JAX reference (independent NHWC conv path, HIGHEST precision).
# ----------------------------------------------------------------------------
def _ref_forward(params, x, rnn_hxs):
    HI = jax.lax.Precision.HIGHEST
    relu = lambda t: jnp.maximum(t, 0.0)
    B = x.shape[0]
    xh = jnp.transpose(x, (0, 2, 3, 1)).astype(jnp.float32)

    def conv2x2(t, w, b):
        Ho, Wo = t.shape[1] - 1, t.shape[2] - 1
        out = jnp.zeros((t.shape[0], Ho, Wo, w.shape[-1]), jnp.float32) + b
        for di in range(2):
            for dj in range(2):
                out = out + jnp.einsum('bhwc,cd->bhwd',
                                       t[:, di:di + Ho, dj:dj + Wo, :],
                                       w[di, dj], precision=HI)
        return out

    def maxpool2(t):
        Bn, Hn, Wn, Cn = t.shape
        t = t[:, :Hn // 2 * 2, :Wn // 2 * 2, :]
        return t.reshape(Bn, Hn // 2, 2, Wn // 2, 2, Cn).max(axis=(2, 4))

    lin = lambda t, w, b: jnp.dot(t, w, precision=HI) + b
    c0, c1 = params['col0'], params['col1']
    lat, cr = params['lateral'], params['critic']

    h0a = maxpool2(relu(conv2x2(xh, c0['conv1_w'], c0['conv1_b'])))
    h0b = maxpool2(relu(conv2x2(xh, c1['conv1_w'], c1['conv1_b'])))

    h1a = relu(conv2x2(h0a, c0['conv2_w'], c0['conv2_b']))
    cur = relu(conv2x2(h0b, c1['conv2_w'], c1['conv2_b']))
    vah = relu(jnp.einsum('bhwc,cd->bhwd', relu(h0a * lat['alpha'][0]),
                          lat['V1_w'], precision=HI) + lat['V1_b'])
    h1b = relu(cur + conv2x2(vah, lat['U1_w'], lat['U1_b']))

    h2a = relu(conv2x2(h1a, c0['conv3_w'], c0['conv3_b']))
    cur = relu(conv2x2(h1b, c1['conv3_w'], c1['conv3_b']))
    vah = relu(jnp.einsum('bhwc,cd->bhwd', relu(h1a * lat['alpha'][1]),
                          lat['V2_w'], precision=HI) + lat['V2_b'])
    h2b = relu(cur + conv2x2(vah, lat['U2_w'], lat['U2_b']))

    zb = h2b.reshape(B, -1)
    cur = lin(jnp.tanh(lin(zb, c1['fc1_w'], c1['fc1_b'])),
              c1['fc2_w'], c1['fc2_b'])
    vah = relu(lin(relu(h2a.reshape(B, -1) * lat['alpha'][2]),
                   lat['V3_w'], lat['V3_b']))
    feat = relu(cur + lin(vah, lat['U3_w'], lat['U3_b']))
    value = lin(jnp.tanh(lin(feat, cr['c1_w'], cr['c1_b'])),
                cr['c2_w'], cr['c2_b'])
    return value, feat, rnn_hxs


if __name__ == "__main__":
    key = jax.random.PRNGKey(0)
    B, C, H, W = 2, 4, 7, 7   # 7x7 grid obs: conv1->6x6, pool->3x3, conv2->2x2, conv3->1x1

    params = init_params(key, num_inputs=C, hidden=_HID)
    packed = pack_params(params)

    x = jax.random.normal(jax.random.fold_in(key, 1000), (B, C, H, W), jnp.float32)
    rnn_hxs = jnp.zeros((B, 1), jnp.float32)   # recurrent_hidden_state_size == 1
    masks = jnp.ones((B, 1), jnp.float32)

    fwd = jax.jit(pnn_forward)
    value, feat, hxs = fwd(packed, x, rnn_hxs, masks)
    jax.block_until_ready((value, feat, hxs))

    assert value.shape == (B, 1) and feat.shape == (B, _HID) and hxs.shape == (B, 1)

    v_ref, f_ref, _ = jax.jit(_ref_forward)(params, x, rnn_hxs)
    # kernel uses bf16 MXU operands (f32 accumulation) -> compare with slack
    assert jnp.allclose(feat, f_ref, atol=5e-2, rtol=5e-2), \
        float(jnp.max(jnp.abs(feat - f_ref)))
    assert jnp.allclose(value, v_ref, atol=5e-2, rtol=5e-2), \
        float(jnp.max(jnp.abs(value - v_ref)))

    print("KERNEL_OK")
</pallas_src>

<mosaic_0001>
module attributes {stable_mosaic.version = 11 : i64} {
  func.func @kernel(%arg0: memref<3xf32, #tpu.memory_space<smem>>, %arg1: memref<24x28xf32, #tpu.memory_space<vmem>>, %arg2: memref<1152x128xbf16, #tpu.memory_space<vmem>>, %arg3: memref<16x128xf32, #tpu.memory_space<vmem>>, %arg4: memref<2x128xf32, #tpu.memory_space<vmem>>, %arg5: memref<16x96xf32, #tpu.memory_space<vmem>>, %arg6: memref<16x96xf32, #tpu.memory_space<vmem>>, %arg7: memref<16x48xf32, #tpu.memory_space<vmem>>, %arg8: memref<16x48xf32, #tpu.memory_space<vmem>>, %arg9: memref<16x24xf32, #tpu.memory_space<vmem>>, %arg10: memref<8x64xf32, #tpu.memory_space<vmem>>, %arg11: memref<8x64xf32, #tpu.memory_space<vmem>>, %arg12: memref<8x32xf32, #tpu.memory_space<vmem>>) attributes {dimension_semantics = [], scalar_prefetch = 0 : i64, scratch_operands = 8 : i64, tpu.core_type = #tpu.core_type<tc>} {
    %cst = arith.constant 0.000000e+00 : f32
    %0 = vector.broadcast %cst : f32 to vector<8x48xf32>
    %c8 = arith.constant 8 : index
    %c0 = arith.constant 0 : index
    %1 = vector.load %arg7[%c8, %c0] : memref<16x48xf32, #tpu.memory_space<vmem>>, vector<8x48xf32>
    tpu.vector_store %arg7[%c8, %c0], %0 {strides = array<i32>} : memref<16x48xf32, #tpu.memory_space<vmem>>, vector<8x48xf32>,
    %cst_0 = arith.constant 0.000000e+00 : f32
    %2 = vector.broadcast %cst_0 : f32 to vector<8x48xf32>
    %c8_1 = arith.constant 8 : index
    %c0_2 = arith.constant 0 : index
    %3 = vector.load %arg8[%c8_1, %c0_2] : memref<16x48xf32, #tpu.memory_space<vmem>>, vector<8x48xf32>
    tpu.vector_store %arg8[%c8_1, %c0_2], %2 {strides = array<i32>} : memref<16x48xf32, #tpu.memory_space<vmem>>, vector<8x48xf32>,
    %cst_3 = arith.constant 0.000000e+00 : f32
    %4 = vector.broadcast %cst_3 : f32 to vector<8x24xf32>
    %c8_4 = arith.constant 8 : index
    %c0_5 = arith.constant 0 : index
    %5 = vector.load %arg9[%c8_4, %c0_5] : memref<16x24xf32, #tpu.memory_space<vmem>>, vector<8x24xf32>
    tpu.vector_store %arg9[%c8_4, %c0_5], %4 {strides = array<i32>} : memref<16x24xf32, #tpu.memory_space<vmem>>, vector<8x24xf32>,
    %c0_6 = arith.constant 0 : index
    %6 = memref.load %arg0[%c0_6] : memref<3xf32, #tpu.memory_space<smem>>
    %c1 = arith.constant 1 : index
    %7 = memref.load %arg0[%c1] : memref<3xf32, #tpu.memory_space<smem>>
    %c2 = arith.constant 2 : index
    %8 = memref.load %arg0[%c2] : memref<3xf32, #tpu.memory_space<smem>>
    %c0_7 = arith.constant 0 : index
    %c0_8 = arith.constant 0 : index
    %9 = vector.load %arg1[%c0_7, %c0_8] : memref<24x28xf32, #tpu.memory_space<vmem>>, vector<16x28xf32>
    %c1_9 = arith.constant 1 : index
    %c0_10 = arith.constant 0 : index
    %10 = vector.load %arg1[%c1_9, %c0_10] : memref<24x28xf32, #tpu.memory_space<vmem>>, vector<16x28xf32>
    %11 = tpu.concatenate %9, %10 in 1 : vector<16x28xf32>, vector<16x28xf32> -> vector<16x56xf32>
    %c0_11 = arith.constant 0 : index
    %c0_12 = arith.constant 0 : index
    %12 = vector.load %arg2[%c0_11, %c0_12] : memref<1152x128xbf16, #tpu.memory_space<vmem>>, vector<56x96xbf16>
    %13 = arith.truncf %11 : vector<16x56xf32> to vector<16x56xbf16>
    %cst_13 = arith.constant dense<0.000000e+00> : vector<16x96xf32>
    %14 = tpu.matmul %13, %12, %cst_13 {dimension_numbers = #tpu.dot_dimension_numbers<[1], [0], [0], [1], [0, 0, 1, 1], [], []>} : vector<16x56xbf16>, vector<56x96xbf16>, vector<16x96xf32> -> vector<16x96xf32>
    %c0_14 = arith.constant 0 : index
    %c0_15 = arith.constant 0 : index
    %15 = vector.load %arg3[%c0_14, %c0_15] : memref<16x128xf32, #tpu.memory_space<vmem>>, vector<1x96xf32>
    %16 = vector.broadcast %15 : vector<1x96xf32> to vector<16x96xf32>
    %17 = arith.addf %14, %16 : vector<16x96xf32>
    %cst_16 = arith.constant 0.000000e+00 : f32
    %18 = vector.broadcast %cst_16 : f32 to vector<16x96xf32>
    %19 = arith.maximumf %17, %18 : vector<16x96xf32>
    %c0_17 = arith.constant 0 : index
    %c0_18 = arith.constant 0 : index
    %20 = vector.load %arg5[%c0_17, %c0_18] : memref<16x96xf32, #tpu.memory_space<vmem>>, vector<16x96xf32>
    tpu.vector_store %arg5[%c0_17, %c0_18], %19 {strides = array<i32>} : memref<16x96xf32, #tpu.memory_space<vmem>>, vector<16x96xf32>,
    %c0_19 = arith.constant 0 : index
    %c0_20 = arith.constant 0 : index
    %21 = vector.load %arg1[%c0_19, %c0_20] : memref<24x28xf32, #tpu.memory_space<vmem>>, vector<16x28xf32>
    %c1_21 = arith.constant 1 : index
    %c0_22 = arith.constant 0 : index
    %22 = vector.load %arg1[%c1_21, %c0_22] : memref<24x28xf32, #tpu.memory_space<vmem>>, vector<16x28xf32>
    %23 = tpu.concatenate %21, %22 in 1 : vector<16x28xf32>, vector<16x28xf32> -> vector<16x56xf32>
    %c64 = arith.constant 64 : index
    %c0_23 = arith.constant 0 : index
    %24 = vector.load %arg2[%c64, %c0_23] : memref<1152x128xbf16, #tpu.memory_space<vmem>>, vector<56x96xbf16>
    %25 = arith.truncf %23 : vector<16x56xf32> to vector<16x56xbf16>
    %cst_24 = arith.constant dense<0.000000e+00> : vector<16x96xf32>
    %26 = tpu.matmul %25, %24, %cst_24 {dimension_numbers = #tpu.dot_dimension_numbers<[1], [0], [0], [1], [0, 0, 1, 1], [], []>} : vector<16x56xbf16>, vector<56x96xbf16>, vector<16x96xf32> -> vector<16x96xf32>
    %c1_25 = arith.constant 1 : index
    %c0_26 = arith.constant 0 : index
    %27 = vector.load %arg3[%c1_25, %c0_26] : memref<16x128xf32, #tpu.memory_space<vmem>>, vector<1x96xf32>
    %28 = vector.broadcast %27 : vector<1x96xf32> to vector<16x96xf32>
    %29 = arith.addf %26, %28 : vector<16x96xf32>
    %cst_27 = arith.constant 0.000000e+00 : f32
    %30 = vector.broadcast %cst_27 : f32 to vector<16x96xf32>
    %31 = arith.maximumf %29, %30 : vector<16x96xf32>
    %c0_28 = arith.constant 0 : index
    %c0_29 = arith.constant 0 : index
    %32 = vector.load %arg6[%c0_28, %c0_29] : memref<16x96xf32, #tpu.memory_space<vmem>>, vector<16x96xf32>
    tpu.vector_store %arg6[%c0_28, %c0_29], %31 {strides = array<i32>} : memref<16x96xf32, #tpu.memory_space<vmem>>, vector<16x96xf32>,
    %c0_30 = arith.constant 0 : index
    %c0_31 = arith.constant 0 : index
    %33 = tpu.strided_load %arg5[%c0_30, %c0_31] {strides = array<i32: 2, 1>} : memref<16x96xf32, #tpu.memory_space<vmem>>, vector<8x96xf32>
    %c1_32 = arith.constant 1 : index
    %c0_33 = arith.constant 0 : index
    %34 = tpu.strided_load %arg5[%c1_32, %c0_33] {strides = array<i32: 2, 1>} : memref<16x96xf32, #tpu.memory_space<vmem>>, vector<8x96xf32>
    %35 = arith.maximumf %33, %34 : vector<8x96xf32>
    %36 = vector.extract_strided_slice %35 {offsets = [0, 0], sizes = [8, 48], strides = [1, 1]} : vector<8x96xf32> to vector<8x48xf32>
    %37 = vector.extract_strided_slice %35 {offsets = [0, 48], sizes = [8, 48], strides = [1, 1]} : vector<8x96xf32> to vector<8x48xf32>
    %38 = arith.maximumf %36, %37 : vector<8x48xf32>
    %c0_34 = arith.constant 0 : index
    %c0_35 = arith.constant 0 : index
    %39 = vector.load %arg7[%c0_34, %c0_35] : memref<16x48xf32, #tpu.memory_space<vmem>>, vector<8x48xf32>
    tpu.vector_store %arg7[%c0_34, %c0_35], %38 {strides = array<i32>} : memref<16x48xf32, #tpu.memory_space<vmem>>, vector<8x48xf32>,
    %c0_36 = arith.constant 0 : index
    %c0_37 = arith.constant 0 : index
    %40 = tpu.strided_load %arg6[%c0_36, %c0_37] {strides = array<i32: 2, 1>} : memref<16x96xf32, #tpu.memory_space<vmem>>, vector<8x96xf32>
    %c1_38 = arith.constant 1 : index
    %c0_39 = arith.constant 0 : index
    %41 = tpu.strided_load %arg6[%c1_38, %c0_39] {strides = array<i32: 2, 1>} : memref<16x96xf32, #tpu.memory_space<vmem>>, vector<8x96xf32>
    %42 = arith.maximumf %40, %41 : vector<8x96xf32>
    %43 = vector.extract_strided_slice %42 {offsets = [0, 0], sizes = [8, 48], strides = [1, 1]} : vector<8x96xf32> to vector<8x48xf32>
    %44 = vector.extract_strided_slice %42 {offsets = [0, 48], sizes = [8, 48], strides = [1, 1]} : vector<8x96xf32> to vector<8x48xf32>
    %45 = arith.maximumf %43, %44 : vector<8x48xf32>
    %c0_40 = arith.constant 0 : index
    %c0_41 = arith.constant 0 : index
    %46 = vector.load %arg8[%c0_40, %c0_41] : memref<16x48xf32, #tpu.memory_space<vmem>>, vector<8x48xf32>
    tpu.vector_store %arg8[%c0_40, %c0_41], %45 {strides = array<i32>} : memref<16x48xf32, #tpu.memory_space<vmem>>, vector<8x48xf32>,
    %c0_42 = arith.constant 0 : index
    %c0_43 = arith.constant 0 : index
    %47 = vector.load %arg7[%c0_42, %c0_43] : memref<16x48xf32, #tpu.memory_space<vmem>>, vector<8x48xf32>
    %c1_44 = arith.constant 1 : index
    %c0_45 = arith.constant 0 : index
    %48 = vector.load %arg7[%c1_44, %c0_45] : memref<16x48xf32, #tpu.memory_space<vmem>>, vector<8x48xf32>
    %49 = tpu.concatenate %47, %48 in 1 : vector<8x48xf32>, vector<8x48xf32> -> vector<8x96xf32>
    %c128 = arith.constant 128 : index
    %c0_46 = arith.constant 0 : index
    %50 = vector.load %arg2[%c128, %c0_46] : memref<1152x128xbf16, #tpu.memory_space<vmem>>, vector<96x64xbf16>
    %51 = arith.truncf %49 : vector<8x96xf32> to vector<8x96xbf16>
    %cst_47 = arith.constant dense<0.000000e+00> : vector<8x64xf32>
    %52 = tpu.matmul %51, %50, %cst_47 {dimension_numbers = #tpu.dot_dimension_numbers<[1], [0], [0], [1], [0, 0, 1, 1], [], []>} : vector<8x96xbf16>, vector<96x64xbf16>, vector<8x64xf32> -> vector<8x64xf32>
    %c2_48 = arith.constant 2 : index
    %c0_49 = arith.constant 0 : index
    %53 = vector.load %arg3[%c2_48, %c0_49] : memref<16x128xf32, #tpu.memory_space<vmem>>, vector<1x64xf32>
    %54 = vector.broadcast %53 : vector<1x64xf32> to vector<8x64xf32>
    %55 = arith.addf %52, %54 : vector<8x64xf32>
    %cst_50 = arith.constant 0.000000e+00 : f32
    %56 = vector.broadcast %cst_50 : f32 to vector<8x64xf32>
    %57 = arith.maximumf %55, %56 : vector<8x64xf32>
    %c0_51 = arith.constant 0 : index
    %c0_52 = arith.constant 0 : index
    %58 = vector.load %arg10[%c0_51, %c0_52] : memref<8x64xf32, #tpu.memory_space<vmem>>, vector<8x64xf32>
    tpu.vector_store %arg10[%c0_51, %c0_52], %57 {strides = array<i32>} : memref<8x64xf32, #tpu.memory_space<vmem>>, vector<8x64xf32>,
    %c0_53 = arith.constant 0 : index
    %c0_54 = arith.constant 0 : index
    %59 = vector.load %arg8[%c0_53, %c0_54] : memref<16x48xf32, #tpu.memory_space<vmem>>, vector<8x48xf32>
    %c1_55 = arith.constant 1 : index
    %c0_56 = arith.constant 0 : index
    %60 = vector.load %arg8[%c1_55, %c0_56] : memref<16x48xf32, #tpu.memory_space<vmem>>, vector<8x48xf32>
    %61 = tpu.concatenate %59, %60 in 1 : vector<8x48xf32>, vector<8x48xf32> -> vector<8x96xf32>
    %c224 = arith.constant 224 : index
    %c0_57 = arith.constant 0 : index
    %62 = vector.load %arg2[%c224, %c0_57] : memref<1152x128xbf16, #tpu.memory_space<vmem>>, vector<96x64xbf16>
    %63 = arith.truncf %61 : vector<8x96xf32> to vector<8x96xbf16>
    %cst_58 = arith.constant dense<0.000000e+00> : vector<8x64xf32>
    %64 = tpu.matmul %63, %62, %cst_58 {dimension_numbers = #tpu.dot_dimension_numbers<[1], [0], [0], [1], [0, 0, 1, 1], [], []>} : vector<8x96xbf16>, vector<96x64xbf16>, vector<8x64xf32> -> vector<8x64xf32>
    %c3 = arith.constant 3 : index
    %c0_59 = arith.constant 0 : index
    %65 = vector.load %arg3[%c3, %c0_59] : memref<16x128xf32, #tpu.memory_space<vmem>>, vector<1x64xf32>
    %66 = vector.broadcast %65 : vector<1x64xf32> to vector<8x64xf32>
    %67 = arith.addf %64, %66 : vector<8x64xf32>
    %cst_60 = arith.constant 0.000000e+00 : f32
    %68 = vector.broadcast %cst_60 : f32 to vector<8x64xf32>
    %69 = arith.maximumf %67, %68 : vector<8x64xf32>
    %c0_61 = arith.constant 0 : index
    %c0_62 = arith.constant 0 : index
    %70 = vector.load %arg7[%c0_61, %c0_62] : memref<16x48xf32, #tpu.memory_space<vmem>>, vector<8x48xf32>
    %71 = vector.broadcast %6 : f32 to vector<8x48xf32>
    %72 = arith.mulf %70, %71 : vector<8x48xf32>
    %cst_63 = arith.constant 0.000000e+00 : f32
    %73 = vector.broadcast %cst_63 : f32 to vector<8x48xf32>
    %74 = arith.maximumf %72, %73 : vector<8x48xf32>
    %c688 = arith.constant 688 : index
    %c0_64 = arith.constant 0 : index
    %75 = vector.load %arg2[%c688, %c0_64] : memref<1152x128xbf16, #tpu.memory_space<vmem>>, vector<48x24xbf16>
    %76 = arith.truncf %74 : vector<8x48xf32> to vector<8x48xbf16>
    %cst_65 = arith.constant dense<0.000000e+00> : vector<8x24xf32>
    %77 = tpu.matmul %76, %75, %cst_65 {dimension_numbers = #tpu.dot_dimension_numbers<[1], [0], [0], [1], [0, 0, 1, 1], [], []>} : vector<8x48xbf16>, vector<48x24xbf16>, vector<8x24xf32> -> vector<8x24xf32>
    %c8_66 = arith.constant 8 : index
    %c0_67 = arith.constant 0 : index
    %78 = vector.load %arg3[%c8_66, %c0_67] : memref<16x128xf32, #tpu.memory_space<vmem>>, vector<1x24xf32>
    %79 = vector.broadcast %78 : vector<1x24xf32> to vector<8x24xf32>
    %80 = arith.addf %77, %79 : vector<8x24xf32>
    %cst_68 = arith.constant 0.000000e+00 : f32
    %81 = vector.broadcast %cst_68 : f32 to vector<8x24xf32>
    %82 = arith.maximumf %80, %81 : vector<8x24xf32>
    %c0_69 = arith.constant 0 : index
    %c0_70 = arith.constant 0 : index
    %83 = vector.load %arg9[%c0_69, %c0_70] : memref<16x24xf32, #tpu.memory_space<vmem>>, vector<8x24xf32>
    tpu.vector_store %arg9[%c0_69, %c0_70], %82 {strides = array<i32>} : memref<16x24xf32, #tpu.memory_space<vmem>>, vector<8x24xf32>,
    %c0_71 = arith.constant 0 : index
    %c0_72 = arith.constant 0 : index
    %84 = vector.load %arg9[%c0_71, %c0_72] : memref<16x24xf32, #tpu.memory_space<vmem>>, vector<8x24xf32>
    %c1_73 = arith.constant 1 : index
    %c0_74 = arith.constant 0 : index
    %85 = vector.load %arg9[%c1_73, %c0_74] : memref<16x24xf32, #tpu.memory_space<vmem>>, vector<8x24xf32>
    %86 = tpu.concatenate %84, %85 in 1 : vector<8x24xf32>, vector<8x24xf32> -> vector<8x48xf32>
    %c320 = arith.constant 320 : index
    %c0_75 = arith.constant 0 : index
    %87 = vector.load %arg2[%c320, %c0_75] : memref<1152x128xbf16, #tpu.memory_space<vmem>>, vector<48x64xbf16>
    %88 = arith.truncf %86 : vector<8x48xf32> to vector<8x48xbf16>
    %cst_76 = arith.constant dense<0.000000e+00> : vector<8x64xf32>
    %89 = tpu.matmul %88, %87, %cst_76 {dimension_numbers = #tpu.dot_dimension_numbers<[1], [0], [0], [1], [0, 0, 1, 1], [], []>} : vector<8x48xbf16>, vector<48x64xbf16>, vector<8x64xf32> -> vector<8x64xf32>
    %c4 = arith.constant 4 : index
    %c0_77 = arith.constant 0 : index
    %90 = vector.load %arg3[%c4, %c0_77] : memref<16x128xf32, #tpu.memory_space<vmem>>, vector<1x64xf32>
    %91 = vector.broadcast %90 : vector<1x64xf32> to vector<8x64xf32>
    %92 = arith.addf %89, %91 : vector<8x64xf32>
    %93 = arith.addf %69, %92 : vector<8x64xf32>
    %cst_78 = arith.constant 0.000000e+00 : f32
    %94 = vector.broadcast %cst_78 : f32 to vector<8x64xf32>
    %95 = arith.maximumf %93, %94 : vector<8x64xf32>
    %c0_79 = arith.constant 0 : index
    %c0_80 = arith.constant 0 : index
    %96 = vector.load %arg11[%c0_79, %c0_80] : memref<8x64xf32, #tpu.memory_space<vmem>>, vector<8x64xf32>
    tpu.vector_store %arg11[%c0_79, %c0_80], %95 {strides = array<i32>} : memref<8x64xf32, #tpu.memory_space<vmem>>, vector<8x64xf32>,
    %c0_81 = arith.constant 0 : index
    %c0_82 = arith.constant 0 : index
    %97 = tpu.strided_load %arg10[%c0_81, %c0_82] {strides = array<i32: 4, 1>} : memref<8x64xf32, #tpu.memory_space<vmem>>, vector<2x64xf32>
    %c1_83 = arith.constant 1 : index
    %c0_84 = arith.constant 0 : index
    %98 = tpu.strided_load %arg10[%c1_83, %c0_84] {strides = array<i32: 4, 1>} : memref<8x64xf32, #tpu.memory_space<vmem>>, vector<2x64xf32>
    %99 = tpu.concatenate %97, %98 in 1 : vector<2x64xf32>, vector<2x64xf32> -> vector<2x128xf32>
    %c368 = arith.constant 368 : index
    %c0_85 = arith.constant 0 : index
    %100 = vector.load %arg2[%c368, %c0_85] : memref<1152x128xbf16, #tpu.memory_space<vmem>>, vector<128x64xbf16>
    %101 = arith.truncf %99 : vector<2x128xf32> to vector<2x128xbf16>
    %cst_86 = arith.constant dense<0.000000e+00> : vector<2x64xf32>
    %102 = tpu.matmul %101, %100, %cst_86 {dimension_numbers = #tpu.dot_dimension_numbers<[1], [0], [0], [1], [0, 0, 1, 1], [], []>} : vector<2x128xbf16>, vector<128x64xbf16>, vector<2x64xf32> -> vector<2x64xf32>
    %c5 = arith.constant 5 : index
    %c0_87 = arith.constant 0 : index
    %103 = vector.load %arg3[%c5, %c0_87] : memref<16x128xf32, #tpu.memory_space<vmem>>, vector<1x64xf32>
    %104 = vector.broadcast %103 : vector<1x64xf32> to vector<2x64xf32>
    %105 = arith.addf %102, %104 : vector<2x64xf32>
    %cst_88 = arith.constant 0.000000e+00 : f32
    %106 = vector.broadcast %cst_88 : f32 to vector<2x64xf32>
    %107 = arith.maximumf %105, %106 : vector<2x64xf32>
    %c0_89 = arith.constant 0 : index
    %c0_90 = arith.constant 0 : index
    %108 = tpu.strided_load %arg11[%c0_89, %c0_90] {strides = array<i32: 4, 1>} : memref<8x64xf32, #tpu.memory_space<vmem>>, vector<2x64xf32>
    %c1_91 = arith.constant 1 : index
    %c0_92 = arith.constant 0 : index
    %109 = tpu.strided_load %arg11[%c1_91, %c0_92] {strides = array<i32: 4, 1>} : memref<8x64xf32, #tpu.memory_space<vmem>>, vector<2x64xf32>
    %110 = tpu.concatenate %108, %109 in 1 : vector<2x64xf32>, vector<2x64xf32> -> vector<2x128xf32>
    %c496 = arith.constant 496 : index
    %c0_93 = arith.constant 0 : index
    %111 = vector.load %arg2[%c496, %c0_93] : memref<1152x128xbf16, #tpu.memory_space<vmem>>, vector<128x64xbf16>
    %112 = arith.truncf %110 : vector<2x128xf32> to vector<2x128xbf16>
    %cst_94 = arith.constant dense<0.000000e+00> : vector<2x64xf32>
    %113 = tpu.matmul %112, %111, %cst_94 {dimension_numbers = #tpu.dot_dimension_numbers<[1], [0], [0], [1], [0, 0, 1, 1], [], []>} : vector<2x128xbf16>, vector<128x64xbf16>, vector<2x64xf32> -> vector<2x64xf32>
    %c6 = arith.constant 6 : index
    %c0_95 = arith.constant 0 : index
    %114 = vector.load %arg3[%c6, %c0_95] : memref<16x128xf32, #tpu.memory_space<vmem>>, vector<1x64xf32>
    %115 = vector.broadcast %114 : vector<1x64xf32> to vector<2x64xf32>
    %116 = arith.addf %113, %115 : vector<2x64xf32>
    %cst_96 = arith.constant 0.000000e+00 : f32
    %117 = vector.broadcast %cst_96 : f32 to vector<2x64xf32>
    %118 = arith.maximumf %116, %117 : vector<2x64xf32>
    %c0_97 = arith.constant 0 : index
    %c0_98 = arith.constant 0 : index
    %119 = vector.load %arg10[%c0_97, %c0_98] : memref<8x64xf32, #tpu.memory_space<vmem>>, vector<8x64xf32>
    %120 = vector.broadcast %7 : f32 to vector<8x64xf32>
    %121 = arith.mulf %119, %120 : vector<8x64xf32>
    %cst_99 = arith.constant 0.000000e+00 : f32
    %122 = vector.broadcast %cst_99 : f32 to vector<8x64xf32>
    %123 = arith.maximumf %121, %122 : vector<8x64xf32>
    %c736 = arith.constant 736 : index
    %c0_100 = arith.constant 0 : index
    %124 = vector.load %arg2[%c736, %c0_100] : memref<1152x128xbf16, #tpu.memory_space<vmem>>, vector<64x32xbf16>
    %125 = arith.truncf %123 : vector<8x64xf32> to vector<8x64xbf16>
    %cst_101 = arith.constant dense<0.000000e+00> : vector<8x32xf32>
    %126 = tpu.matmul %125, %124, %cst_101 {dimension_numbers = #tpu.dot_dimension_numbers<[1], [0], [0], [1], [0, 0, 1, 1], [], []>} : vector<8x64xbf16>, vector<64x32xbf16>, vector<8x32xf32> -> vector<8x32xf32>
    %c9 = arith.constant 9 : index
    %c0_102 = arith.constant 0 : index
    %127 = vector.load %arg3[%c9, %c0_102] : memref<16x128xf32, #tpu.memory_space<vmem>>, vector<1x32xf32>
    %128 = vector.broadcast %127 : vector<1x32xf32> to vector<8x32xf32>
    %129 = arith.addf %126, %128 : vector<8x32xf32>
    %cst_103 = arith.constant 0.000000e+00 : f32
    %130 = vector.broadcast %cst_103 : f32 to vector<8x32xf32>
    %131 = arith.maximumf %129, %130 : vector<8x32xf32>
    %c0_104 = arith.constant 0 : index
    %c0_105 = arith.constant 0 : index
    %132 = vector.load %arg12[%c0_104, %c0_105] : memref<8x32xf32, #tpu.memory_space<vmem>>, vector<8x32xf32>
    tpu.vector_store %arg12[%c0_104, %c0_105], %131 {strides = array<i32>} : memref<8x32xf32, #tpu.memory_space<vmem>>, vector<8x32xf32>,
    %c0_106 = arith.constant 0 : index
    %c0_107 = arith.constant 0 : index
    %133 = tpu.strided_load %arg12[%c0_106, %c0_107] {strides = array<i32: 4, 1>} : memref<8x32xf32, #tpu.memory_space<vmem>>, vector<2x32xf32>
    %c1_108 = arith.constant 1 : index
    %c0_109 = arith.constant 0 : index
    %134 = tpu.strided_load %arg12[%c1_108, %c0_109] {strides = array<i32: 4, 1>} : memref<8x32xf32, #tpu.memory_space<vmem>>, vector<2x32xf32>
    %135 = tpu.concatenate %133, %134 in 1 : vector<2x32xf32>, vector<2x32xf32> -> vector<2x64xf32>
    %c624 = arith.constant 624 : index
    %c0_110 = arith.constant 0 : index
    %136 = vector.load %arg2[%c624, %c0_110] : memref<1152x128xbf16, #tpu.memory_space<vmem>>, vector<64x64xbf16>
    %137 = arith.truncf %135 : vector<2x64xf32> to vector<2x64xbf16>
    %cst_111 = arith.constant dense<0.000000e+00> : vector<2x64xf32>
    %138 = tpu.matmul %137, %136, %cst_111 {dimension_numbers = #tpu.dot_dimension_numbers<[1], [0], [0], [1], [0, 0, 1, 1], [], []>} : vector<2x64xbf16>, vector<64x64xbf16>, vector<2x64xf32> -> vector<2x64xf32>
    %c7 = arith.constant 7 : index
    %c0_112 = arith.constant 0 : index
    %139 = vector.load %arg3[%c7, %c0_112] : memref<16x128xf32, #tpu.memory_space<vmem>>, vector<1x64xf32>
    %140 = vector.broadcast %139 : vector<1x64xf32> to vector<2x64xf32>
    %141 = arith.addf %138, %140 : vector<2x64xf32>
    %142 = arith.addf %118, %141 : vector<2x64xf32>
    %cst_113 = arith.constant 0.000000e+00 : f32
    %143 = vector.broadcast %cst_113 : f32 to vector<2x64xf32>
    %144 = arith.maximumf %142, %143 : vector<2x64xf32>
    %c896 = arith.constant 896 : index
    %c0_114 = arith.constant 0 : index
    %145 = vector.load %arg2[%c896, %c0_114] : memref<1152x128xbf16, #tpu.memory_space<vmem>>, vector<64x64xbf16>
    %146 = arith.truncf %144 : vector<2x64xf32> to vector<2x64xbf16>
    %cst_115 = arith.constant dense<0.000000e+00> : vector<2x64xf32>
    %147 = tpu.matmul %146, %145, %cst_115 {dimension_numbers = #tpu.dot_dimension_numbers<[1], [0], [0], [1], [0, 0, 1, 1], [], []>} : vector<2x64xbf16>, vector<64x64xbf16>, vector<2x64xf32> -> vector<2x64xf32>
    %c12 = arith.constant 12 : index
    %c0_116 = arith.constant 0 : index
    %148 = vector.load %arg3[%c12, %c0_116] : memref<16x128xf32, #tpu.memory_space<vmem>>, vector<1x64xf32>
    %149 = vector.broadcast %148 : vector<1x64xf32> to vector<2x64xf32>
    %150 = arith.addf %147, %149 : vector<2x64xf32>
    %151 = math.tanh %150 : vector<2x64xf32>
    %c960 = arith.constant 960 : index
    %c0_117 = arith.constant 0 : index
    %152 = vector.load %arg2[%c960, %c0_117] : memref<1152x128xbf16, #tpu.memory_space<vmem>>, vector<64x64xbf16>
    %153 = arith.truncf %151 : vector<2x64xf32> to vector<2x64xbf16>
    %cst_118 = arith.constant dense<0.000000e+00> : vector<2x64xf32>
    %154 = tpu.matmul %153, %152, %cst_118 {dimension_numbers = #tpu.dot_dimension_numbers<[1], [0], [0], [1], [0, 0, 1, 1], [], []>} : vector<2x64xbf16>, vector<64x64xbf16>, vector<2x64xf32> -> vector<2x64xf32>
    %c13 = arith.constant 13 : index
    %c0_119 = arith.constant 0 : index
    %155 = vector.load %arg3[%c13, %c0_119] : memref<16x128xf32, #tpu.memory_space<vmem>>, vector<1x64xf32>
    %156 = vector.broadcast %155 : vector<1x64xf32> to vector<2x64xf32>
    %157 = arith.addf %154, %156 : vector<2x64xf32>
    %158 = vector.broadcast %8 : f32 to vector<2x64xf32>
    %159 = arith.mulf %107, %158 : vector<2x64xf32>
    %cst_120 = arith.constant 0.000000e+00 : f32
    %160 = vector.broadcast %cst_120 : f32 to vector<2x64xf32>
    %161 = arith.maximumf %159, %160 : vector<2x64xf32>
    %c800 = arith.constant 800 : index
    %c0_121 = arith.constant 0 : index
    %162 = vector.load %arg2[%c800, %c0_121] : memref<1152x128xbf16, #tpu.memory_space<vmem>>, vector<64x32xbf16>
    %163 = arith.truncf %161 : vector<2x64xf32> to vector<2x64xbf16>
    %cst_122 = arith.constant dense<0.000000e+00> : vector<2x32xf32>
    %164 = tpu.matmul %163, %162, %cst_122 {dimension_numbers = #tpu.dot_dimension_numbers<[1], [0], [0], [1], [0, 0, 1, 1], [], []>} : vector<2x64xbf16>, vector<64x32xbf16>, vector<2x32xf32> -> vector<2x32xf32>
    %c10 = arith.constant 10 : index
    %c0_123 = arith.constant 0 : index
    %165 = vector.load %arg3[%c10, %c0_123] : memref<16x128xf32, #tpu.memory_space<vmem>>, vector<1x32xf32>
    %166 = vector.broadcast %165 : vector<1x32xf32> to vector<2x32xf32>
    %167 = arith.addf %164, %166 : vector<2x32xf32>
    %cst_124 = arith.constant 0.000000e+00 : f32
    %168 = vector.broadcast %cst_124 : f32 to vector<2x32xf32>
    %169 = arith.maximumf %167, %168 : vector<2x32xf32>
    %c864 = arith.constant 864 : index
    %c0_125 = arith.constant 0 : index
    %170 = vector.load %arg2[%c864, %c0_125] : memref<1152x128xbf16, #tpu.memory_space<vmem>>, vector<32x64xbf16>
    %171 = arith.truncf %169 : vector<2x32xf32> to vector<2x32xbf16>
    %cst_126 = arith.constant dense<0.000000e+00> : vector<2x64xf32>
    %172 = tpu.matmul %171, %170, %cst_126 {dimension_numbers = #tpu.dot_dimension_numbers<[1], [0], [0], [1], [0, 0, 1, 1], [], []>} : vector<2x32xbf16>, vector<32x64xbf16>, vector<2x64xf32> -> vector<2x64xf32>
    %173 = arith.addf %157, %172 : vector<2x64xf32>
    %c11 = arith.constant 11 : index
    %c0_127 = arith.constant 0 : index
    %174 = vector.load %arg3[%c11, %c0_127] : memref<16x128xf32, #tpu.memory_space<vmem>>, vector<1x64xf32>
    %175 = vector.broadcast %174 : vector<1x64xf32> to vector<2x64xf32>
    %176 = arith.addf %173, %175 : vector<2x64xf32>
    %cst_128 = arith.constant 0.000000e+00 : f32
    %177 = vector.broadcast %cst_128 : f32 to vector<2x64xf32>
    %178 = arith.maximumf %176, %177 : vector<2x64xf32>
    %c1024 = arith.constant 1024 : index
    %c0_129 = arith.constant 0 : index
    %179 = vector.load %arg2[%c1024, %c0_129] : memref<1152x128xbf16, #tpu.memory_space<vmem>>, vector<64x64xbf16>
    %180 = arith.truncf %178 : vector<2x64xf32> to vector<2x64xbf16>
    %cst_130 = arith.constant dense<0.000000e+00> : vector<2x64xf32>
    %181 = tpu.matmul %180, %179, %cst_130 {dimension_numbers = #tpu.dot_dimension_numbers<[1], [0], [0], [1], [0, 0, 1, 1], [], []>} : vector<2x64xbf16>, vector<64x64xbf16>, vector<2x64xf32> -> vector<2x64xf32>
    %c14 = arith.constant 14 : index
    %c0_131 = arith.constant 0 : index
    %182 = vector.load %arg3[%c14, %c0_131] : memref<16x128xf32, #tpu.memory_space<vmem>>, vector<1x64xf32>
    %183 = vector.broadcast %182 : vector<1x64xf32> to vector<2x64xf32>
    %184 = arith.addf %181, %183 : vector<2x64xf32>
    %185 = math.tanh %184 : vector<2x64xf32>
    %c1088 = arith.constant 1088 : index
    %c0_132 = arith.constant 0 : index
    %186 = vector.load %arg2[%c1088, %c0_132] : memref<1152x128xbf16, #tpu.memory_space<vmem>>, vector<64x1xbf16>
    %187 = arith.truncf %185 : vector<2x64xf32> to vector<2x64xbf16>
    %cst_133 = arith.constant dense<0.000000e+00> : vector<2x1xf32>
    %188 = tpu.matmul %187, %186, %cst_133 {dimension_numbers = #tpu.dot_dimension_numbers<[1], [0], [0], [1], [0, 0, 1, 1], [], []>} : vector<2x64xbf16>, vector<64x1xbf16>, vector<2x1xf32> -> vector<2x1xf32>
    %c15 = arith.constant 15 : index
    %c0_134 = arith.constant 0 : index
    %189 = vector.load %arg3[%c15, %c0_134] : memref<16x128xf32, #tpu.memory_space<vmem>>, vector<1x1xf32>
    %190 = vector.broadcast %189 : vector<1x1xf32> to vector<2x1xf32>
    %191 = arith.addf %188, %190 : vector<2x1xf32>
    %192 = vector.shape_cast %191 : vector<2x1xf32> to vector<2x1xf32>
    %193 = vector.broadcast %192 : vector<2x1xf32> to vector<2x64xf32>
    %194 = tpu.concatenate %178, %193 in 1 : vector<2x64xf32>, vector<2x64xf32> -> vector<2x128xf32>
    %c0_135 = arith.constant 0 : index
    %c0_136 = arith.constant 0 : index
    %195 = vector.load %arg4[%c0_135, %c0_136] : memref<2x128xf32, #tpu.memory_space<vmem>>, vector<2x128xf32>
    tpu.vector_store %arg4[%c0_135, %c0_136], %194 {strides = array<i32>} : memref<2x128xf32, #tpu.memory_space<vmem>>, vector<2x128xf32>,
    return
  }
}

</mosaic_0001>

<llo_original>
// kernel: pnn_forward.1
$region0: #{pnn_forward.1}
  #allocation0 [shape = 'u32[]', space=smem, size = 0x4, offset = 0x4, fixed_abs, tag = 'smem constant byte address 0x4 - core index']
  #allocation1 [shape = 'u32[144,128]{1,0:T(1,128)}', space=vmem, size = 0x12000, scoped, tag = 'internal scratch']
  #allocation2 [shape = 'f32[16,96]{1,0:T(8,128)}', space=vmem, size = 0x2000, scoped, tag = 'scratch operand']
  #allocation3 [shape = 'f32[16,96]{1,0:T(8,128)}', space=vmem, size = 0x2000, scoped, tag = 'scratch operand']
  #allocation4 [shape = 'f32[16,48]{1,0:T(8,128)}', space=vmem, size = 0x2000, scoped, tag = 'scratch operand']
  #allocation5 [shape = 'f32[16,48]{1,0:T(8,128)}', space=vmem, size = 0x2000, scoped, tag = 'scratch operand']
  #allocation6 [shape = 'f32[16,24]{1,0:T(8,128)}', space=vmem, size = 0x2000, scoped, tag = 'scratch operand']
  #allocation7 [shape = 'f32[8,64]{1,0:T(8,128)}', space=vmem, size = 0x1000, scoped, tag = 'scratch operand']
  #allocation8 [shape = 'f32[8,64]{1,0:T(8,128)}', space=vmem, size = 0x1000, scoped, tag = 'scratch operand']
  #allocation9 [shape = 'f32[8,32]{1,0:T(8,128)}', space=vmem, size = 0x1000, scoped, tag = 'scratch operand']
  %s0 = inlined_call_operand.vmem [shape: f32[3], index: 0, kind: input, shape index: {}]
  %s1 = inlined_call_operand.vmem [shape: f32[24,28], index: 1, kind: input, shape index: {}]
  %s2 = inlined_call_operand.hbm [shape: bf16[1152,128], index: 2, kind: input, shape index: {}]
  %s3 = inlined_call_operand.vmem [shape: f32[16,128], index: 3, kind: input, shape index: {}]
  %s4 = inlined_call_operand.vmem [shape: f32[2,128], index: 4, kind: output, shape index: {}]
  %s5 = sld [smem:[#allocation0]]
  $region34: #{pnn_forward.1} parent=0
    _
  %s7 = ssub.s32 1, %s5
  %s8 = scalar_select 0, %s7, %s5
  $region1: #{pnn_forward.1} parent=0
    #allocation10 [shape = 'u8[512]{0}', space=smem, size = 0x200, scoped, tag = 'input window, operand 0, single buffered']
    #allocation11 [shape = 's32[1]{0}', space=sflag, size = 0x4, scoped, tag = 'scoped memory for pnn_forward.1']
    #allocation12 [shape = 's32[1]{0}', space=sflag, size = 0x4, scoped, tag = 'scoped memory for pnn_forward.1']
    #allocation13 [shape = 'u8[294912]{0}', space=vmem, size = 0x48000, scoped, tag = 'input window, operand 2, single buffered']
    %9 = vsyncpa [#allocation12], 0
    %10 = vsyncpa [#allocation11], 0
    // Predicated region
    $region2: #{pnn_forward.1} parent=1 // pred_check
      _
    $region3: #{pnn_forward.1} parent=1 // pred_check_branch
      %12 = sbr.rel (0) target = $region5
    $region4: #{pnn_forward.1} parent=1 // pred_region
      %s14 = ssub.s32 16, 16
      %15 = vsyncadd [#allocation12], %s14
      %s17 = sshll.u32 %s0, 4
      %s18 = int_to_ptr.vmem [resolvable:$true] %s17
      %20 = dma.vmem_to_smem %s18, 16, [#allocation10], [#allocation12]
    $region5: #{pnn_forward.1} parent=1 // pred_fallthru
      _
    // Predicated region
    $region6: #{pnn_forward.1} parent=1 // pred_check
      _
    $region7: #{pnn_forward.1} parent=1 // pred_check_branch
      %22 = sbr.rel (0) target = $region9
    $region8: #{pnn_forward.1} parent=1 // pred_region
      _
    $region9: #{pnn_forward.1} parent=1 // pred_fallthru
      _
    // Predicated region
    $region10: #{pnn_forward.1} parent=1 // pred_check
      _
    $region11: #{pnn_forward.1} parent=1 // pred_check_branch
      %24 = sbr.rel (0) target = $region13
    $region12: #{pnn_forward.1} parent=1 // pred_region
      %s26 = ssub.s32 9216, 9216
      %27 = vsyncadd [#allocation11], %s26
      %s28 = sshll.u32 [#allocation13], 4
      %s29 = int_to_ptr.vmem [resolvable:$true] %s28
      %34 = dma.hbm_to_vmem [thread:$0]  %s2, 9216, %s29, [#allocation11], 64, 64, 4
    $region13: #{pnn_forward.1} parent=1 // pred_fallthru
      _
    // Predicated region
    $region14: #{pnn_forward.1} parent=1 // pred_check
      _
    $region15: #{pnn_forward.1} parent=1 // pred_check_branch
      %36 = sbr.rel (0) target = $region17
    $region16: #{pnn_forward.1} parent=1 // pred_region
      _
    $region17: #{pnn_forward.1} parent=1 // pred_fallthru
      _
    // Predicated region
    $region18: #{pnn_forward.1} parent=1 // pred_check
      _
    $region19: #{pnn_forward.1} parent=1 // pred_check_branch
      %38 = sbr.rel (0) target = $region21
    $region20: #{pnn_forward.1} parent=1 // pred_region
      %39 = dma.done [#allocation12], 16
    $region21: #{pnn_forward.1} parent=1 // pred_fallthru
      _
    // Predicated region
    $region22: #{pnn_forward.1} parent=1 // pred_check
      _
    $region23: #{pnn_forward.1} parent=1 // pred_check_branch
      %41 = sbr.rel (0) target = $region25
    $region24: #{pnn_forward.1} parent=1 // pred_region
      %42 = dma.done [#allocation11], 9216
    $region25: #{pnn_forward.1} parent=1 // pred_fallthru
      _
    %43 = sfence
    %vm45 = vcmask 392192
    %46 = vst.msk [vmem:[#allocation4 + $0x8] sm:$0xff] %vm45, 0.0
    %47 = vst.msk [vmem:[#allocation5 + $0x8] sm:$0xff] %vm45, 0.0
    %vm48 = vcmask 195584
    %49 = vst.msk [vmem:[#allocation6 + $0x8] sm:$0xff] %vm48, 0.0
    %s50 = sld [smem:[#allocation10]]
    %s51 = sld [smem:[#allocation10 + $0x1]]
    %s52 = sld [smem:[#allocation10 + $0x2]]
    %v53 = vld [vmem:[%s1] sm:$0xff]
    %v54 = vld [vmem:[%s1 + $0x8] sm:$0xff]
    %v55 = vld [vmem:[%s1 + $0x1] sm:$0xff]
    %v56 = vld [vmem:[%s1 + $0x9] sm:$0xff]
    %59 = vrot.lane.b32.xlu0 %v55, 28
    %v60 = vpop.permute.xlu0 %59
    %61 = vrot.lane.b32.xlu0 %v56, 28
    %v62 = vpop.permute.xlu0 %61
    %vm65 = vcmask 228352
    %v66 = vsel %vm65, %v53, %v60
    %v67 = vsel %vm65, %v54, %v62
    %v68 = vld [vmem:[#allocation13] sm:$0xf]
    %v69 = vld [vmem:[#allocation13 + $0x4] sm:$0xf]
    %v70 = vld [vmem:[#allocation13 + $0x8] sm:$0xf]
    %v71 = vld [vmem:[#allocation13 + $0xc] sm:$0xf]
    %v72 = vld [vmem:[#allocation13 + $0x10] sm:$0xf]
    %v73 = vld [vmem:[#allocation13 + $0x14] sm:$0xf]
    %v74 = vld [vmem:[#allocation13 + $0x18] sm:$0xf]
    %v75 = vpack.c.bf16 %v67, %v66
    %v76 = vld [vmem:[%s3] sm:$0x1]
    %v77 = vlaneseq
    %v78 = vshrl.u32 %v77, 7
    %v79 = vsub.s32 0, %v78
    %v80 = vrot.slane %v76, %v79
    %v88 = vunpack.c.l.b16 %v68
    %v89 = vunpack.c.l.b16 %v69
    %v90 = vunpack.c.l.b16 %v70
    %v91 = vunpack.c.l.b16 %v71
    %v92 = vunpack.c.l.b16 %v72
    %v93 = vunpack.c.l.b16 %v73
    %v94 = vunpack.c.l.b16 %v74
    %v95 = vpack.c.b16 %v89, %v88
    %v96 = vpack.c.b16 %v91, %v90
    %v97 = vpack.c.b16 %v93, %v92
    %v98 = vpack.c.b16 %v94, %v94
    %vm102 = vcmask 457728
    %v104 = vsel %vm102, %v75, 0
    %vm106 = vcmask 1043456
    %v108 = vsel %vm106, %v98, 0
    %110 = vmatprep.subr.bf16.mxu0 0
    %111 = vmatpush1.bf16.msra.mxu0 %v95
    %112 = vmatprep.subr.bf16.mxu0 0
    %113 = vmatpush1.bf16.msra.mxu0 %v96
    %114 = vmatprep.subr.bf16.mxu0 0
    %115 = vmatpush1.bf16.msra.mxu0 %v97
    %116 = vmatprep.subr.bf16.mxu0 0
    %117 = vmatpush1.bf16.msra.mxu0 %v108
    %118 = vmatprep.subr.bf16.mxu0 0
    %119 = vmatpush1.bf16.msra.mxu0 0
    %120 = vmatprep.subr.bf16.mxu0 0
    %121 = vmatpush1.bf16.msra.mxu0 0
    %122 = vmatprep.subr.bf16.mxu0 0
    %123 = vmatpush1.bf16.msra.mxu0 0
    %124 = vmatprep.subr.bf16.mxu0 0
    %125 = vmatpush1.bf16.msra.mxu0 0
    %126 = vmatprep.subr.bf16.mxu0 0
    %127 = vmatpush1.bf16.msra.mxu0 0
    %128 = vmatprep.subr.bf16.mxu0 0
    %129 = vmatpush1.bf16.msra.mxu0 0
    %130 = vmatprep.subr.bf16.mxu0 0
    %131 = vmatpush1.bf16.msra.mxu0 0
    %132 = vmatprep.subr.bf16.mxu0 0
    %133 = vmatpush1.bf16.msra.mxu0 0
    %134 = vmatprep.subr.bf16.mxu0 0
    %135 = vmatpush1.bf16.msra.mxu0 0
    %136 = vmatprep.subr.bf16.mxu0 0
    %137 = vmatpush1.bf16.msra.mxu0 0
    %138 = vmatprep.subr.bf16.mxu0 0
    %139 = vmatpush1.bf16.msra.mxu0 0
    %140 = vmatprep.subr.bf16.mxu0 0
    %141 = vmatpush1.bf16.msra.mxu0 0
    %142 = vmatprep.mubr.bf16.mxu0 0
    %143 = vmatmul.mubr.bf16.gmra.mrb[0].mxu0 %v104
    %v144 = vpop.f32.mrb[0].mxu0
    %v145 = vadd.f32 %v80, %v144
    %v146 = vpop.f32.mrb[0].mxu0
    %v147 = vpop.f32.mrb[0].mxu0
    %v148 = vadd.f32 %v80, %v147
    %v149 = vpop.f32.mrb[0].mxu0
    %150 = vdwg.mxu0
    %v151 = vmax.f32 %v145, 0.0
    %v152 = vmax.f32 %v148, 0.0
    %vm153 = vcmask 785408
    %154 = vst.msk [vmem:[#allocation2] sm:$0xff] %vm153, %v151
    %155 = vst.msk [vmem:[#allocation2 + $0x8] sm:$0xff] %vm153, %v152
    %v156 = vld [vmem:[%s1] sm:$0xff]
    %v157 = vld [vmem:[%s1 + $0x8] sm:$0xff]
    %v158 = vld [vmem:[%s1 + $0x1] sm:$0xff]
    %v159 = vld [vmem:[%s1 + $0x9] sm:$0xff]
    %162 = vrot.lane.b32.xlu0 %v158, 28
    %v163 = vpop.permute.xlu0 %162
    %164 = vrot.lane.b32.xlu0 %v159, 28
    %v165 = vpop.permute.xlu0 %164
    %v168 = vsel %vm65, %v156, %v163
    %v169 = vsel %vm65, %v157, %v165
    %v170 = vld [vmem:[#allocation13 + $0x20] sm:$0xf]
    %v171 = vld [vmem:[#allocation13 + $0x24] sm:$0xf]
    %v172 = vld [vmem:[#allocation13 + $0x28] sm:$0xf]
    %v173 = vld [vmem:[#allocation13 + $0x2c] sm:$0xf]
    %v174 = vld [vmem:[#allocation13 + $0x30] sm:$0xf]
    %v175 = vld [vmem:[#allocation13 + $0x34] sm:$0xf]
    %v176 = vld [vmem:[#allocation13 + $0x38] sm:$0xf]
    %v177 = vpack.c.bf16 %v169, %v168
    %v178 = vld [vmem:[%s3 + $0x1] sm:$0x1]
    %v179 = vlaneseq
    %v180 = vshrl.u32 %v179, 7
    %v181 = vsub.s32 0, %v180
    %v182 = vrot.slane %v178, %v181
    %v190 = vunpack.c.l.b16 %v170
    %v191 = vunpack.c.l.b16 %v171
    %v192 = vunpack.c.l.b16 %v172
    %v193 = vunpack.c.l.b16 %v173
    %v194 = vunpack.c.l.b16 %v174
    %v195 = vunpack.c.l.b16 %v175
    %v196 = vunpack.c.l.b16 %v176
    %v197 = vpack.c.b16 %v191, %v190
    %v198 = vpack.c.b16 %v193, %v192
    %v199 = vpack.c.b16 %v195, %v194
    %v200 = vpack.c.b16 %v196, %v196
    %v205 = vsel %vm102, %v177, 0
    %v208 = vsel %vm106, %v200, 0
    %210 = vmatprep.subr.bf16.mxu0 0
    %211 = vmatpush1.bf16.msra.mxu0 %v197
    %212 = vmatprep.subr.bf16.mxu0 0
    %213 = vmatpush1.bf16.msra.mxu0 %v198
    %214 = vmatprep.subr.bf16.mxu0 0
    %215 = vmatpush1.bf16.msra.mxu0 %v199
    %216 = vmatprep.subr.bf16.mxu0 0
    %217 = vmatpush1.bf16.msra.mxu0 %v208
    %218 = vmatprep.subr.bf16.mxu0 0
    %219 = vmatpush1.bf16.msra.mxu0 0
    %220 = vmatprep.subr.bf16.mxu0 0
    %221 = vmatpush1.bf16.msra.mxu0 0
    %222 = vmatprep.subr.bf16.mxu0 0
    %223 = vmatpush1.bf16.msra.mxu0 0
    %224 = vmatprep.subr.bf16.mxu0 0
    %225 = vmatpush1.bf16.msra.mxu0 0
    %226 = vmatprep.subr.bf16.mxu0 0
    %227 = vmatpush1.bf16.msra.mxu0 0
    %228 = vmatprep.subr.bf16.mxu0 0
    %229 = vmatpush1.bf16.msra.mxu0 0
    %230 = vmatprep.subr.bf16.mxu0 0
    %231 = vmatpush1.bf16.msra.mxu0 0
    %232 = vmatprep.subr.bf16.mxu0 0
    %233 = vmatpush1.bf16.msra.mxu0 0
    %234 = vmatprep.subr.bf16.mxu0 0
    %235 = vmatpush1.bf16.msra.mxu0 0
    %236 = vmatprep.subr.bf16.mxu0 0
    %237 = vmatpush1.bf16.msra.mxu0 0
    %238 = vmatprep.subr.bf16.mxu0 0
    %239 = vmatpush1.bf16.msra.mxu0 0
    %240 = vmatprep.subr.bf16.mxu0 0
    %241 = vmatpush1.bf16.msra.mxu0 0
    %242 = vmatprep.mubr.bf16.mxu0 0
    %243 = vmatmul.mubr.bf16.gmra.mrb[0].mxu0 %v205
    %v244 = vpop.f32.mrb[0].mxu0
    %v245 = vadd.f32 %v182, %v244
    %v246 = vpop.f32.mrb[0].mxu0
    %v247 = vpop.f32.mrb[0].mxu0
    %v248 = vadd.f32 %v182, %v247
    %v249 = vpop.f32.mrb[0].mxu0
    %250 = vdwg.mxu0
    %v251 = vmax.f32 %v245, 0.0
    %v252 = vmax.f32 %v248, 0.0
    %253 = vst.msk [vmem:[#allocation3] sm:$0xff] %vm153, %v251
    %254 = vst.msk [vmem:[#allocation3 + $0x8] sm:$0xff] %vm153, %v252
    %v255 = vld [vmem:[#allocation2] ss:$2 sm:$0xff]
    %s256 = scalar_lea.vmem [#allocation2], 1
    %v257 = vld [vmem:[%s256] ss:$2 sm:$0xff]
    %v258 = vmax.f32 %v255, %v257
    %260 = vrot.lane.b32.xlu0 %v258, 80
    %v261 = vpop.permute.xlu0 %260
    %v263 = vmax.f32 %v258, %v261
    %264 = vst.msk [vmem:[#allocation4] sm:$0xff] %vm45, %v263
    %v265 = vld [vmem:[#allocation3] ss:$2 sm:$0xff]
    %s266 = scalar_lea.vmem [#allocation3], 1
    %v267 = vld [vmem:[%s266] ss:$2 sm:$0xff]
    %v268 = vmax.f32 %v265, %v267
    %270 = vrot.lane.b32.xlu0 %v268, 80
    %v271 = vpop.permute.xlu0 %270
    %v273 = vmax.f32 %v268, %v271
    %274 = vst.msk [vmem:[#allocation5] sm:$0xff] %vm45, %v273
    %v275 = vld [vmem:[#allocation4] sm:$0xff]
    %v276 = vld [vmem:[#allocation4 + $0x1] sm:$0xff]
    %278 = vrot.lane.b32.xlu0 %v276, 48
    %v279 = vpop.permute.xlu0 %278
    %v281 = vsel %vm45, %v275, %v279
    %v282 = vld [vmem:[#allocation13 + $0x40] sm:$0xf]
    %v283 = vld [vmem:[#allocation13 + $0x44] sm:$0xf]
    %v284 = vld [vmem:[#allocation13 + $0x48] sm:$0xf]
    %v285 = vld [vmem:[#allocation13 + $0x4c] sm:$0xf]
    %v286 = vld [vmem:[#allocation13 + $0x50] sm:$0xf]
    %v287 = vld [vmem:[#allocation13 + $0x54] sm:$0xf]
    %v288 = vld [vmem:[#allocation13 + $0x58] sm:$0xf]
    %v289 = vld [vmem:[#allocation13 + $0x5c] sm:$0xf]
    %v290 = vld [vmem:[#allocation13 + $0x60] sm:$0xf]
    %v291 = vld [vmem:[#allocation13 + $0x64] sm:$0xf]
    %v292 = vld [vmem:[#allocation13 + $0x68] sm:$0xf]
    %v293 = vld [vmem:[#allocation13 + $0x6c] sm:$0xf]
    %v294 = vpack.c.bf16 %v281, %v281
    %v295 = vld [vmem:[%s3 + $0x2] sm:$0x1]
    %v296 = vlaneseq
    %v297 = vshrl.u32 %v296, 7
    %v298 = vsub.s32 0, %v297
    %v299 = vrot.slane %v295, %v298
    %v312 = vunpack.c.l.b16 %v282
    %v313 = vunpack.c.l.b16 %v283
    %v314 = vunpack.c.l.b16 %v284
    %v315 = vunpack.c.l.b16 %v285
    %v316 = vunpack.c.l.b16 %v286
    %v317 = vunpack.c.l.b16 %v287
    %v318 = vunpack.c.l.b16 %v288
    %v319 = vunpack.c.l.b16 %v289
    %v320 = vunpack.c.l.b16 %v290
    %v321 = vunpack.c.l.b16 %v291
    %v322 = vunpack.c.l.b16 %v292
    %v323 = vunpack.c.l.b16 %v293
    %v324 = vpack.c.b16 %v313, %v312
    %v325 = vpack.c.b16 %v315, %v314
    %v326 = vpack.c.b16 %v317, %v316
    %v327 = vpack.c.b16 %v319, %v318
    %v328 = vpack.c.b16 %v321, %v320
    %v329 = vpack.c.b16 %v323, %v322
    %v337 = vsel %vm153, %v294, 0
    %339 = vmatprep.subr.bf16.mxu0 0
    %340 = vmatpush1.bf16.msra.mxu0 %v324
    %341 = vmatprep.subr.bf16.mxu0 0
    %342 = vmatpush1.bf16.msra.mxu0 %v325
    %343 = vmatprep.subr.bf16.mxu0 0
    %344 = vmatpush1.bf16.msra.mxu0 %v326
    %345 = vmatprep.subr.bf16.mxu0 0
    %346 = vmatpush1.bf16.msra.mxu0 %v327
    %347 = vmatprep.subr.bf16.mxu0 0
    %348 = vmatpush1.bf16.msra.mxu0 %v328
    %349 = vmatprep.subr.bf16.mxu0 0
    %350 = vmatpush1.bf16.msra.mxu0 %v329
    %351 = vmatprep.subr.bf16.mxu0 0
    %352 = vmatpush1.bf16.msra.mxu0 0
    %353 = vmatprep.subr.bf16.mxu0 0
    %354 = vmatpush1.bf16.msra.mxu0 0
    %355 = vmatprep.subr.bf16.mxu0 0
    %356 = vmatpush1.bf16.msra.mxu0 0
    %357 = vmatprep.subr.bf16.mxu0 0
    %358 = vmatpush1.bf16.msra.mxu0 0
    %359 = vmatprep.subr.bf16.mxu0 0
    %360 = vmatpush1.bf16.msra.mxu0 0
    %361 = vmatprep.subr.bf16.mxu0 0
    %362 = vmatpush1.bf16.msra.mxu0 0
    %363 = vmatprep.subr.bf16.mxu0 0
    %364 = vmatpush1.bf16.msra.mxu0 0
    %365 = vmatprep.subr.bf16.mxu0 0
    %366 = vmatpush1.bf16.msra.mxu0 0
    %367 = vmatprep.subr.bf16.mxu0 0
    %368 = vmatpush1.bf16.msra.mxu0 0
    %369 = vmatprep.subr.bf16.mxu0 0
    %370 = vmatpush1.bf16.msra.mxu0 0
    %371 = vmatprep.mubr.bf16.mxu0 0
    %372 = vmatmul.mubr.bf16.gmra.mrb[0].mxu0 %v337
    %v373 = vpop.f32.mrb[0].mxu0
    %v374 = vadd.f32 %v299, %v373
    %v375 = vpop.f32.mrb[0].mxu0
    %v376 = vpop.f32.mrb[0].mxu0
    %v377 = vpop.f32.mrb[0].mxu0
    %378 = vdwg.mxu0
    %v379 = vmax.f32 %v374, 0.0
    %vm380 = vcmask 523264
    %381 = vst.msk [vmem:[#allocation7] sm:$0xff] %vm380, %v379
    %v382 = vld [vmem:[#allocation5] sm:$0xff]
    %v383 = vld [vmem:[#allocation5 + $0x1] sm:$0xff]
    %385 = vrot.lane.b32.xlu0 %v383, 48
    %v386 = vpop.permute.xlu0 %385
    %v388 = vsel %vm45, %v382, %v386
    %v389 = vld [vmem:[#allocation13 + $0x70] sm:$0xf]
    %v390 = vld [vmem:[#allocation13 + $0x74] sm:$0xf]
    %v391 = vld [vmem:[#allocation13 + $0x78] sm:$0xf]
    %v392 = vld [vmem:[#allocation13 + $0x7c] sm:$0xf]
    %v393 = vld [vmem:[#allocation13 + $0x80] sm:$0xf]
    %v394 = vld [vmem:[#allocation13 + $0x84] sm:$0xf]
    %v395 = vld [vmem:[#allocation13 + $0x88] sm:$0xf]
    %v396 = vld [vmem:[#allocation13 + $0x8c] sm:$0xf]
    %v397 = vld [vmem:[#allocation13 + $0x90] sm:$0xf]
    %v398 = vld [vmem:[#allocation13 + $0x94] sm:$0xf]
    %v399 = vld [vmem:[#allocation13 + $0x98] sm:$0xf]
    %v400 = vld [vmem:[#allocation13 + $0x9c] sm:$0xf]
    %v401 = vpack.c.bf16 %v388, %v388
    %v402 = vld [vmem:[%s3 + $0x3] sm:$0x1]
    %v403 = vlaneseq
    %v404 = vshrl.u32 %v403, 7
    %v405 = vsub.s32 0, %v404
    %v406 = vrot.slane %v402, %v405
    %v419 = vunpack.c.l.b16 %v389
    %v420 = vunpack.c.l.b16 %v390
    %v421 = vunpack.c.l.b16 %v391
    %v422 = vunpack.c.l.b16 %v392
    %v423 = vunpack.c.l.b16 %v393
    %v424 = vunpack.c.l.b16 %v394
    %v425 = vunpack.c.l.b16 %v395
    %v426 = vunpack.c.l.b16 %v396
    %v427 = vunpack.c.l.b16 %v397
    %v428 = vunpack.c.l.b16 %v398
    %v429 = vunpack.c.l.b16 %v399
    %v430 = vunpack.c.l.b16 %v400
    %v431 = vpack.c.b16 %v420, %v419
    %v432 = vpack.c.b16 %v422, %v421
    %v433 = vpack.c.b16 %v424, %v423
    %v434 = vpack.c.b16 %v426, %v425
    %v435 = vpack.c.b16 %v428, %v427
    %v436 = vpack.c.b16 %v430, %v429
    %v444 = vsel %vm153, %v401, 0
    %446 = vmatprep.subr.bf16.mxu0 0
    %447 = vmatpush1.bf16.msra.mxu0 %v431
    %448 = vmatprep.subr.bf16.mxu0 0
    %449 = vmatpush1.bf16.msra.mxu0 %v432
    %450 = vmatprep.subr.bf16.mxu0 0
    %451 = vmatpush1.bf16.msra.mxu0 %v433
    %452 = vmatprep.subr.bf16.mxu0 0
    %453 = vmatpush1.bf16.msra.mxu0 %v434
    %454 = vmatprep.subr.bf16.mxu0 0
    %455 = vmatpush1.bf16.msra.mxu0 %v435
    %456 = vmatprep.subr.bf16.mxu0 0
    %457 = vmatpush1.bf16.msra.mxu0 %v436
    %458 = vmatprep.subr.bf16.mxu0 0
    %459 = vmatpush1.bf16.msra.mxu0 0
    %460 = vmatprep.subr.bf16.mxu0 0
    %461 = vmatpush1.bf16.msra.mxu0 0
    %462 = vmatprep.subr.bf16.mxu0 0
    %463 = vmatpush1.bf16.msra.mxu0 0
    %464 = vmatprep.subr.bf16.mxu0 0
    %465 = vmatpush1.bf16.msra.mxu0 0
    %466 = vmatprep.subr.bf16.mxu0 0
    %467 = vmatpush1.bf16.msra.mxu0 0
    %468 = vmatprep.subr.bf16.mxu0 0
    %469 = vmatpush1.bf16.msra.mxu0 0
    %470 = vmatprep.subr.bf16.mxu0 0
    %471 = vmatpush1.bf16.msra.mxu0 0
    %472 = vmatprep.subr.bf16.mxu0 0
    %473 = vmatpush1.bf16.msra.mxu0 0
    %474 = vmatprep.subr.bf16.mxu0 0
    %475 = vmatpush1.bf16.msra.mxu0 0
    %476 = vmatprep.subr.bf16.mxu0 0
    %477 = vmatpush1.bf16.msra.mxu0 0
    %478 = vmatprep.mubr.bf16.mxu0 0
    %479 = vmatmul.mubr.bf16.gmra.mrb[0].mxu0 %v444
    %v480 = vpop.f32.mrb[0].mxu0
    %v481 = vadd.f32 %v406, %v480
    %v482 = vpop.f32.mrb[0].mxu0
    %v483 = vpop.f32.mrb[0].mxu0
    %v484 = vpop.f32.mrb[0].mxu0
    %485 = vdwg.mxu0
    %v486 = vmax.f32 %v481, 0.0
    %v487 = vld [vmem:[#allocation4] sm:$0xff]
    %v488 = vstv %s50
    %v489 = vmul.f32 %v487, %v488
    %v490 = vmax.f32 %v489, 0.0
    %v491 = vld [vmem:[#allocation13 + $0x158] sm:$0xf]
    %v492 = vld [vmem:[#allocation13 + $0x15c] sm:$0xf]
    %v493 = vld [vmem:[#allocation13 + $0x160] sm:$0xf]
    %v494 = vld [vmem:[#allocation13 + $0x164] sm:$0xf]
    %v495 = vld [vmem:[#allocation13 + $0x168] sm:$0xf]
    %v496 = vld [vmem:[#allocation13 + $0x16c] sm:$0xf]
    %v497 = vpack.c.bf16 %v490, %v490
    %v498 = vld [vmem:[%s3 + $0x8] sm:$0x1]
    %v499 = vlaneseq
    %v500 = vshrl.u32 %v499, 7
    %v501 = vsub.s32 0, %v500
    %v502 = vrot.slane %v498, %v501
    %v509 = vunpack.c.l.b16 %v491
    %v510 = vunpack.c.l.b16 %v492
    %v511 = vunpack.c.l.b16 %v493
    %v512 = vunpack.c.l.b16 %v494
    %v513 = vunpack.c.l.b16 %v495
    %v514 = vunpack.c.l.b16 %v496
    %v515 = vpack.c.b16 %v510, %v509
    %v516 = vpack.c.b16 %v512, %v511
    %v517 = vpack.c.b16 %v514, %v513
    %v522 = vsel %vm45, %v497, 0
    %524 = vmatprep.subr.bf16.mxu0 0
    %525 = vmatpush1.bf16.msra.mxu0 %v515
    %526 = vmatprep.subr.bf16.mxu0 0
    %527 = vmatpush1.bf16.msra.mxu0 %v516
    %528 = vmatprep.subr.bf16.mxu0 0
    %529 = vmatpush1.bf16.msra.mxu0 %v517
    %530 = vmatprep.subr.bf16.mxu0 0
    %531 = vmatpush1.bf16.msra.mxu0 0
    %532 = vmatprep.subr.bf16.mxu0 0
    %533 = vmatpush1.bf16.msra.mxu0 0
    %534 = vmatprep.subr.bf16.mxu0 0
    %535 = vmatpush1.bf16.msra.mxu0 0
    %536 = vmatprep.subr.bf16.mxu0 0
    %537 = vmatpush1.bf16.msra.mxu0 0
    %538 = vmatprep.subr.bf16.mxu0 0
    %539 = vmatpush1.bf16.msra.mxu0 0
    %540 = vmatprep.subr.bf16.mxu0 0
    %541 = vmatpush1.bf16.msra.mxu0 0
    %542 = vmatprep.subr.bf16.mxu0 0
    %543 = vmatpush1.bf16.msra.mxu0 0
    %544 = vmatprep.subr.bf16.mxu0 0
    %545 = vmatpush1.bf16.msra.mxu0 0
    %546 = vmatprep.subr.bf16.mxu0 0
    %547 = vmatpush1.bf16.msra.mxu0 0
    %548 = vmatprep.subr.bf16.mxu0 0
    %549 = vmatpush1.bf16.msra.mxu0 0
    %550 = vmatprep.subr.bf16.mxu0 0
    %551 = vmatpush1.bf16.msra.mxu0 0
    %552 = vmatprep.subr.bf16.mxu0 0
    %553 = vmatpush1.bf16.msra.mxu0 0
    %554 = vmatprep.subr.bf16.mxu0 0
    %555 = vmatpush1.bf16.msra.mxu0 0
    %556 = vmatprep.mubr.bf16.mxu0 0
    %557 = vmatmul.mubr.bf16.gmra.mrb[0].mxu0 %v522
    %v558 = vpop.f32.mrb[0].mxu0
    %v559 = vadd.f32 %v502, %v558
    %v560 = vpop.f32.mrb[0].mxu0
    %v561 = vpop.f32.mrb[0].mxu0
    %v562 = vpop.f32.mrb[0].mxu0
    %563 = vdwg.mxu0
    %v564 = vmax.f32 %v559, 0.0
    %565 = vst.msk [vmem:[#allocation6] sm:$0xff] %vm48, %v564
    %v566 = vld [vmem:[#allocation6] sm:$0xff]
    %v567 = vld [vmem:[#allocation6 + $0x1] sm:$0xff]
    %569 = vrot.lane.b32.xlu0 %v567, 24
    %v570 = vpop.permute.xlu0 %569
    %v572 = vsel %vm48, %v566, %v570
    %v573 = vld [vmem:[#allocation13 + $0xa0] sm:$0xf]
    %v574 = vld [vmem:[#allocation13 + $0xa4] sm:$0xf]
    %v575 = vld [vmem:[#allocation13 + $0xa8] sm:$0xf]
    %v576 = vld [vmem:[#allocation13 + $0xac] sm:$0xf]
    %v577 = vld [vmem:[#allocation13 + $0xb0] sm:$0xf]
    %v578 = vld [vmem:[#allocation13 + $0xb4] sm:$0xf]
    %v579 = vpack.c.bf16 %v572, %v572
    %v580 = vld [vmem:[%s3 + $0x4] sm:$0x1]
    %v581 = vlaneseq
    %v582 = vshrl.u32 %v581, 7
    %v583 = vsub.s32 0, %v582
    %v584 = vrot.slane %v580, %v583
    %v591 = vunpack.c.l.b16 %v573
    %v592 = vunpack.c.l.b16 %v574
    %v593 = vunpack.c.l.b16 %v575
    %v594 = vunpack.c.l.b16 %v576
    %v595 = vunpack.c.l.b16 %v577
    %v596 = vunpack.c.l.b16 %v578
    %v597 = vpack.c.b16 %v592, %v591
    %v598 = vpack.c.b16 %v594, %v593
    %v599 = vpack.c.b16 %v596, %v595
    %v604 = vsel %vm45, %v579, 0
    %606 = vmatprep.subr.bf16.mxu0 0
    %607 = vmatpush1.bf16.msra.mxu0 %v597
    %608 = vmatprep.subr.bf16.mxu0 0
    %609 = vmatpush1.bf16.msra.mxu0 %v598
    %610 = vmatprep.subr.bf16.mxu0 0
    %611 = vmatpush1.bf16.msra.mxu0 %v599
    %612 = vmatprep.subr.bf16.mxu0 0
    %613 = vmatpush1.bf16.msra.mxu0 0
    %614 = vmatprep.subr.bf16.mxu0 0
    %615 = vmatpush1.bf16.msra.mxu0 0
    %616 = vmatprep.subr.bf16.mxu0 0
    %617 = vmatpush1.bf16.msra.mxu0 0
    %618 = vmatprep.subr.bf16.mxu0 0
    %619 = vmatpush1.bf16.msra.mxu0 0
    %620 = vmatprep.subr.bf16.mxu0 0
    %621 = vmatpush1.bf16.msra.mxu0 0
    %622 = vmatprep.subr.bf16.mxu0 0
    %623 = vmatpush1.bf16.msra.mxu0 0
    %624 = vmatprep.subr.bf16.mxu0 0
    %625 = vmatpush1.bf16.msra.mxu0 0
    %626 = vmatprep.subr.bf16.mxu0 0
    %627 = vmatpush1.bf16.msra.mxu0 0
    %628 = vmatprep.subr.bf16.mxu0 0
    %629 = vmatpush1.bf16.msra.mxu0 0
    %630 = vmatprep.subr.bf16.mxu0 0
    %631 = vmatpush1.bf16.msra.mxu0 0
    %632 = vmatprep.subr.bf16.mxu0 0
    %633 = vmatpush1.bf16.msra.mxu0 0
    %634 = vmatprep.subr.bf16.mxu0 0
    %635 = vmatpush1.bf16.msra.mxu0 0
    %636 = vmatprep.subr.bf16.mxu0 0
    %637 = vmatpush1.bf16.msra.mxu0 0
    %638 = vmatprep.mubr.bf16.mxu0 0
    %639 = vmatmul.mubr.bf16.gmra.mrb[0].mxu0 %v604
    %v640 = vpop.f32.mrb[0].mxu0
    %v641 = vadd.f32 %v584, %v640
    %v642 = vpop.f32.mrb[0].mxu0
    %v643 = vpop.f32.mrb[0].mxu0
    %v644 = vpop.f32.mrb[0].mxu0
    %645 = vdwg.mxu0
    %v646 = vadd.f32 %v486, %v641
    %v647 = vmax.f32 %v646, 0.0
    %648 = vst.msk [vmem:[#allocation8] sm:$0xff] %vm380, %v647
    %v649 = vld [vmem:[#allocation7] ss:$4 sm:$0x3]
    %s650 = scalar_lea.vmem [#allocation7], 1
    %v651 = vld [vmem:[%s650] ss:$4 sm:$0x3]
    %653 = vrot.lane.b32.xlu0 %v651, 64
    %v654 = vpop.permute.xlu0 %653
    %v656 = vsel %vm380, %v649, %v654
    %v657 = vld [vmem:[#allocation13 + $0xb8] sm:$0xf]
    %v658 = vld [vmem:[#allocation13 + $0xbc] sm:$0xf]
    %v659 = vld [vmem:[#allocation13 + $0xc0] sm:$0xf]
    %v660 = vld [vmem:[#allocation13 + $0xc4] sm:$0xf]
    %v661 = vld [vmem:[#allocation13 + $0xc8] sm:$0xf]
    %v662 = vld [vmem:[#allocation13 + $0xcc] sm:$0xf]
    %v663 = vld [vmem:[#allocation13 + $0xd0] sm:$0xf]
    %v664 = vld [vmem:[#allocation13 + $0xd4] sm:$0xf]
    %v665 = vld [vmem:[#allocation13 + $0xd8] sm:$0xf]
    %v666 = vld [vmem:[#allocation13 + $0xdc] sm:$0xf]
    %v667 = vld [vmem:[#allocation13 + $0xe0] sm:$0xf]
    %v668 = vld [vmem:[#allocation13 + $0xe4] sm:$0xf]
    %v669 = vld [vmem:[#allocation13 + $0xe8] sm:$0xf]
    %v670 = vld [vmem:[#allocation13 + $0xec] sm:$0xf]
    %v671 = vld [vmem:[#allocation13 + $0xf0] sm:$0xf]
    %v672 = vld [vmem:[#allocation13 + $0xf4] sm:$0xf]
    %v673 = vpack.c.bf16 %v656, %v656
    %v674 = vld [vmem:[%s3 + $0x5] sm:$0x1]
    %v675 = vlaneseq
    %v676 = vshrl.u32 %v675, 7
    %v677 = vsub.s32 0, %v676
    %v678 = vrot.slane %v674, %v677
    %v695 = vunpack.c.l.b16 %v657
    %v696 = vunpack.c.l.b16 %v658
    %v697 = vunpack.c.l.b16 %v659
    %v698 = vunpack.c.l.b16 %v660
    %v699 = vunpack.c.l.b16 %v661
    %v700 = vunpack.c.l.b16 %v662
    %v701 = vunpack.c.l.b16 %v663
    %v702 = vunpack.c.l.b16 %v664
    %v703 = vunpack.c.l.b16 %v665
    %v704 = vunpack.c.l.b16 %v666
    %v705 = vunpack.c.l.b16 %v667
    %v706 = vunpack.c.l.b16 %v668
    %v707 = vunpack.c.l.b16 %v669
    %v708 = vunpack.c.l.b16 %v670
    %v709 = vunpack.c.l.b16 %v671
    %v710 = vunpack.c.l.b16 %v672
    %v711 = vpack.c.b16 %v696, %v695
    %v712 = vpack.c.b16 %v698, %v697
    %v713 = vpack.c.b16 %v700, %v699
    %v714 = vpack.c.b16 %v702, %v701
    %v715 = vpack.c.b16 %v704, %v703
    %v716 = vpack.c.b16 %v706, %v705
    %v717 = vpack.c.b16 %v708, %v707
    %v718 = vpack.c.b16 %v710, %v709
    %727 = vmatprep.subr.bf16.mxu0 0
    %728 = vmatpush1.bf16.msra.mxu0 %v711
    %729 = vmatprep.subr.bf16.mxu0 0
    %730 = vmatpush1.bf16.msra.mxu0 %v712
    %731 = vmatprep.subr.bf16.mxu0 0
    %732 = vmatpush1.bf16.msra.mxu0 %v713
    %733 = vmatprep.subr.bf16.mxu0 0
    %734 = vmatpush1.bf16.msra.mxu0 %v714
    %735 = vmatprep.subr.bf16.mxu0 0
    %736 = vmatpush1.bf16.msra.mxu0 %v715
    %737 = vmatprep.subr.bf16.mxu0 0
    %738 = vmatpush1.bf16.msra.mxu0 %v716
    %739 = vmatprep.subr.bf16.mxu0 0
    %740 = vmatpush1.bf16.msra.mxu0 %v717
    %741 = vmatprep.subr.bf16.mxu0 0
    %742 = vmatpush1.bf16.msra.mxu0 %v718
    %743 = vmatprep.subr.bf16.mxu0 0
    %744 = vmatpush1.bf16.msra.mxu0 0
    %745 = vmatprep.subr.bf16.mxu0 0
    %746 = vmatpush1.bf16.msra.mxu0 0
    %747 = vmatprep.subr.bf16.mxu0 0
    %748 = vmatpush1.bf16.msra.mxu0 0
    %749 = vmatprep.subr.bf16.mxu0 0
    %750 = vmatpush1.bf16.msra.mxu0 0
    %751 = vmatprep.subr.bf16.mxu0 0
    %752 = vmatpush1.bf16.msra.mxu0 0
    %753 = vmatprep.subr.bf16.mxu0 0
    %754 = vmatpush1.bf16.msra.mxu0 0
    %755 = vmatprep.subr.bf16.mxu0 0
    %756 = vmatpush1.bf16.msra.mxu0 0
    %757 = vmatprep.subr.bf16.mxu0 0
    %758 = vmatpush1.bf16.msra.mxu0 0
    %759 = vmatprep.mubr.bf16.mxu0 0
    %760 = vmatmul.mubr.bf16.gmra.mrb[0].mxu0 %v673
    %v761 = vpop.f32.mrb[0].mxu0
    %v762 = vadd.f32 %v678, %v761
    %v763 = vpop.f32.mrb[0].mxu0
    %v764 = vpop.f32.mrb[0].mxu0
    %v765 = vpop.f32.mrb[0].mxu0
    %766 = vdwg.mxu0
    %v767 = vmax.f32 %v762, 0.0
    %v768 = vld [vmem:[#allocation8] ss:$4 sm:$0x3]
    %s769 = scalar_lea.vmem [#allocation8], 1
    %v770 = vld [vmem:[%s769] ss:$4 sm:$0x3]
    %772 = vrot.lane.b32.xlu0 %v770, 64
    %v773 = vpop.permute.xlu0 %772
    %v775 = vsel %vm380, %v768, %v773
    %v776 = vld [vmem:[#allocation13 + $0xf8] sm:$0xf]
    %v777 = vld [vmem:[#allocation13 + $0xfc] sm:$0xf]
    %v778 = vld [vmem:[#allocation13 + $0x100] sm:$0xf]
    %v779 = vld [vmem:[#allocation13 + $0x104] sm:$0xf]
    %v780 = vld [vmem:[#allocation13 + $0x108] sm:$0xf]
    %v781 = vld [vmem:[#allocation13 + $0x10c] sm:$0xf]
    %v782 = vld [vmem:[#allocation13 + $0x110] sm:$0xf]
    %v783 = vld [vmem:[#allocation13 + $0x114] sm:$0xf]
    %v784 = vld [vmem:[#allocation13 + $0x118] sm:$0xf]
    %v785 = vld [vmem:[#allocation13 + $0x11c] sm:$0xf]
    %v786 = vld [vmem:[#allocation13 + $0x120] sm:$0xf]
    %v787 = vld [vmem:[#allocation13 + $0x124] sm:$0xf]
    %v788 = vld [vmem:[#allocation13 + $0x128] sm:$0xf]
    %v789 = vld [vmem:[#allocation13 + $0x12c] sm:$0xf]
    %v790 = vld [vmem:[#allocation13 + $0x130] sm:$0xf]
    %v791 = vld [vmem:[#allocation13 + $0x134] sm:$0xf]
    %v792 = vpack.c.bf16 %v775, %v775
    %v793 = vld [vmem:[%s3 + $0x6] sm:$0x1]
    %v794 = vlaneseq
    %v795 = vshrl.u32 %v794, 7
    %v796 = vsub.s32 0, %v795
    %v797 = vrot.slane %v793, %v796
    %v814 = vunpack.c.l.b16 %v776
    %v815 = vunpack.c.l.b16 %v777
    %v816 = vunpack.c.l.b16 %v778
    %v817 = vunpack.c.l.b16 %v779
    %v818 = vunpack.c.l.b16 %v780
    %v819 = vunpack.c.l.b16 %v781
    %v820 = vunpack.c.l.b16 %v782
    %v821 = vunpack.c.l.b16 %v783
    %v822 = vunpack.c.l.b16 %v784
    %v823 = vunpack.c.l.b16 %v785
    %v824 = vunpack.c.l.b16 %v786
    %v825 = vunpack.c.l.b16 %v787
    %v826 = vunpack.c.l.b16 %v788
    %v827 = vunpack.c.l.b16 %v789
    %v828 = vunpack.c.l.b16 %v790
    %v829 = vunpack.c.l.b16 %v791
    %v830 = vpack.c.b16 %v815, %v814
    %v831 = vpack.c.b16 %v817, %v816
    %v832 = vpack.c.b16 %v819, %v818
    %v833 = vpack.c.b16 %v821, %v820
    %v834 = vpack.c.b16 %v823, %v822
    %v835 = vpack.c.b16 %v825, %v824
    %v836 = vpack.c.b16 %v827, %v826
    %v837 = vpack.c.b16 %v829, %v828
    %846 = vmatprep.subr.bf16.mxu0 0
    %847 = vmatpush1.bf16.msra.mxu0 %v830
    %848 = vmatprep.subr.bf16.mxu0 0
    %849 = vmatpush1.bf16.msra.mxu0 %v831
    %850 = vmatprep.subr.bf16.mxu0 0
    %851 = vmatpush1.bf16.msra.mxu0 %v832
    %852 = vmatprep.subr.bf16.mxu0 0
    %853 = vmatpush1.bf16.msra.mxu0 %v833
    %854 = vmatprep.subr.bf16.mxu0 0
    %855 = vmatpush1.bf16.msra.mxu0 %v834
    %856 = vmatprep.subr.bf16.mxu0 0
    %857 = vmatpush1.bf16.msra.mxu0 %v835
    %858 = vmatprep.subr.bf16.mxu0 0
    %859 = vmatpush1.bf16.msra.mxu0 %v836
    %860 = vmatprep.subr.bf16.mxu0 0
    %861 = vmatpush1.bf16.msra.mxu0 %v837
    %862 = vmatprep.subr.bf16.mxu0 0
    %863 = vmatpush1.bf16.msra.mxu0 0
    %864 = vmatprep.subr.bf16.mxu0 0
    %865 = vmatpush1.bf16.msra.mxu0 0
    %866 = vmatprep.subr.bf16.mxu0 0
    %867 = vmatpush1.bf16.msra.mxu0 0
    %868 = vmatprep.subr.bf16.mxu0 0
    %869 = vmatpush1.bf16.msra.mxu0 0
    %870 = vmatprep.subr.bf16.mxu0 0
    %871 = vmatpush1.bf16.msra.mxu0 0
    %872 = vmatprep.subr.bf16.mxu0 0
    %873 = vmatpush1.bf16.msra.mxu0 0
    %874 = vmatprep.subr.bf16.mxu0 0
    %875 = vmatpush1.bf16.msra.mxu0 0
    %876 = vmatprep.subr.bf16.mxu0 0
    %877 = vmatpush1.bf16.msra.mxu0 0
    %878 = vmatprep.mubr.bf16.mxu0 0
    %879 = vmatmul.mubr.bf16.gmra.mrb[0].mxu0 %v792
    %v880 = vpop.f32.mrb[0].mxu0
    %v881 = vadd.f32 %v797, %v880
    %v882 = vpop.f32.mrb[0].mxu0
    %v883 = vpop.f32.mrb[0].mxu0
    %v884 = vpop.f32.mrb[0].mxu0
    %885 = vdwg.mxu0
    %v886 = vmax.f32 %v881, 0.0
    %v887 = vld [vmem:[#allocation7] sm:$0xff]
    %v888 = vstv %s51
    %v889 = vmul.f32 %v887, %v888
    %v890 = vmax.f32 %v889, 0.0
    %v891 = vld [vmem:[#allocation13 + $0x170] sm:$0xf]
    %v892 = vld [vmem:[#allocation13 + $0x174] sm:$0xf]
    %v893 = vld [vmem:[#allocation13 + $0x178] sm:$0xf]
    %v894 = vld [vmem:[#allocation13 + $0x17c] sm:$0xf]
    %v895 = vld [vmem:[#allocation13 + $0x180] sm:$0xf]
    %v896 = vld [vmem:[#allocation13 + $0x184] sm:$0xf]
    %v897 = vld [vmem:[#allocation13 + $0x188] sm:$0xf]
    %v898 = vld [vmem:[#allocation13 + $0x18c] sm:$0xf]
    %v899 = vpack.c.bf16 %v890, %v890
    %v900 = vld [vmem:[%s3 + $0x9] sm:$0x1]
    %v901 = vlaneseq
    %v902 = vshrl.u32 %v901, 7
    %v903 = vsub.s32 0, %v902
    %v904 = vrot.slane %v900, %v903
    %v913 = vunpack.c.l.b16 %v891
    %v914 = vunpack.c.l.b16 %v892
    %v915 = vunpack.c.l.b16 %v893
    %v916 = vunpack.c.l.b16 %v894
    %v917 = vunpack.c.l.b16 %v895
    %v918 = vunpack.c.l.b16 %v896
    %v919 = vunpack.c.l.b16 %v897
    %v920 = vunpack.c.l.b16 %v898
    %v921 = vpack.c.b16 %v914, %v913
    %v922 = vpack.c.b16 %v916, %v915
    %v923 = vpack.c.b16 %v918, %v917
    %v924 = vpack.c.b16 %v920, %v919
    %v930 = vsel %vm380, %v899, 0
    %932 = vmatprep.subr.bf16.mxu0 0
    %933 = vmatpush1.bf16.msra.mxu0 %v921
    %934 = vmatprep.subr.bf16.mxu0 0
    %935 = vmatpush1.bf16.msra.mxu0 %v922
    %936 = vmatprep.subr.bf16.mxu0 0
    %937 = vmatpush1.bf16.msra.mxu0 %v923
    %938 = vmatprep.subr.bf16.mxu0 0
    %939 = vmatpush1.bf16.msra.mxu0 %v924
    %940 = vmatprep.subr.bf16.mxu0 0
    %941 = vmatpush1.bf16.msra.mxu0 0
    %942 = vmatprep.subr.bf16.mxu0 0
    %943 = vmatpush1.bf16.msra.mxu0 0
    %944 = vmatprep.subr.bf16.mxu0 0
    %945 = vmatpush1.bf16.msra.mxu0 0
    %946 = vmatprep.subr.bf16.mxu0 0
    %947 = vmatpush1.bf16.msra.mxu0 0
    %948 = vmatprep.subr.bf16.mxu0 0
    %949 = vmatpush1.bf16.msra.mxu0 0
    %950 = vmatprep.subr.bf16.mxu0 0
    %951 = vmatpush1.bf16.msra.mxu0 0
    %952 = vmatprep.subr.bf16.mxu0 0
    %953 = vmatpush1.bf16.msra.mxu0 0
    %954 = vmatprep.subr.bf16.mxu0 0
    %955 = vmatpush1.bf16.msra.mxu0 0
    %956 = vmatprep.subr.bf16.mxu0 0
    %957 = vmatpush1.bf16.msra.mxu0 0
    %958 = vmatprep.subr.bf16.mxu0 0
    %959 = vmatpush1.bf16.msra.mxu0 0
    %960 = vmatprep.subr.bf16.mxu0 0
    %961 = vmatpush1.bf16.msra.mxu0 0
    %962 = vmatprep.subr.bf16.mxu0 0
    %963 = vmatpush1.bf16.msra.mxu0 0
    %964 = vmatprep.mubr.bf16.mxu0 0
    %965 = vmatmul.mubr.bf16.gmra.mrb[0].mxu0 %v930
    %v966 = vpop.f32.mrb[0].mxu0
    %v967 = vadd.f32 %v904, %v966
    %v968 = vpop.f32.mrb[0].mxu0
    %v969 = vpop.f32.mrb[0].mxu0
    %v970 = vpop.f32.mrb[0].mxu0
    %971 = vdwg.mxu0
    %v972 = vmax.f32 %v967, 0.0
    %vm973 = vcmask 261120
    %974 = vst.msk [vmem:[#allocation9] sm:$0xff] %vm973, %v972
    %v975 = vld [vmem:[#allocation9] ss:$4 sm:$0x3]
    %s976 = scalar_lea.vmem [#allocation9], 1
    %v977 = vld [vmem:[%s976] ss:$4 sm:$0x3]
    %979 = vrot.lane.b32.xlu0 %v977, 32
    %v980 = vpop.permute.xlu0 %979
    %v982 = vsel %vm973, %v975, %v980
    %v983 = vld [vmem:[#allocation13 + $0x138] sm:$0xf]
    %v984 = vld [vmem:[#allocation13 + $0x13c] sm:$0xf]
    %v985 = vld [vmem:[#allocation13 + $0x140] sm:$0xf]
    %v986 = vld [vmem:[#allocation13 + $0x144] sm:$0xf]
    %v987 = vld [vmem:[#allocation13 + $0x148] sm:$0xf]
    %v988 = vld [vmem:[#allocation13 + $0x14c] sm:$0xf]
    %v989 = vld [vmem:[#allocation13 + $0x150] sm:$0xf]
    %v990 = vld [vmem:[#allocation13 + $0x154] sm:$0xf]
    %v991 = vpack.c.bf16 %v982, %v982
    %v992 = vld [vmem:[%s3 + $0x7] sm:$0x1]
    %v993 = vlaneseq
    %v994 = vshrl.u32 %v993, 7
    %v995 = vsub.s32 0, %v994
    %v996 = vrot.slane %v992, %v995
    %v1005 = vunpack.c.l.b16 %v983
    %v1006 = vunpack.c.l.b16 %v984
    %v1007 = vunpack.c.l.b16 %v985
    %v1008 = vunpack.c.l.b16 %v986
    %v1009 = vunpack.c.l.b16 %v987
    %v1010 = vunpack.c.l.b16 %v988
    %v1011 = vunpack.c.l.b16 %v989
    %v1012 = vunpack.c.l.b16 %v990
    %v1013 = vpack.c.b16 %v1006, %v1005
    %v1014 = vpack.c.b16 %v1008, %v1007
    %v1015 = vpack.c.b16 %v1010, %v1009
    %v1016 = vpack.c.b16 %v1012, %v1011
    %v1022 = vsel %vm380, %v991, 0
    %1024 = vmatprep.subr.bf16.mxu0 0
    %1025 = vmatpush1.bf16.msra.mxu0 %v1013
    %1026 = vmatprep.subr.bf16.mxu0 0
    %1027 = vmatpush1.bf16.msra.mxu0 %v1014
    %1028 = vmatprep.subr.bf16.mxu0 0
    %1029 = vmatpush1.bf16.msra.mxu0 %v1015
    %1030 = vmatprep.subr.bf16.mxu0 0
    %1031 = vmatpush1.bf16.msra.mxu0 %v1016
    %1032 = vmatprep.subr.bf16.mxu0 0
    %1033 = vmatpush1.bf16.msra.mxu0 0
    %1034 = vmatprep.subr.bf16.mxu0 0
    %1035 = vmatpush1.bf16.msra.mxu0 0
    %1036 = vmatprep.subr.bf16.mxu0 0
    %1037 = vmatpush1.bf16.msra.mxu0 0
    %1038 = vmatprep.subr.bf16.mxu0 0
    %1039 = vmatpush1.bf16.msra.mxu0 0
    %1040 = vmatprep.subr.bf16.mxu0 0
    %1041 = vmatpush1.bf16.msra.mxu0 0
    %1042 = vmatprep.subr.bf16.mxu0 0
    %1043 = vmatpush1.bf16.msra.mxu0 0
    %1044 = vmatprep.subr.bf16.mxu0 0
    %1045 = vmatpush1.bf16.msra.mxu0 0
    %1046 = vmatprep.subr.bf16.mxu0 0
    %1047 = vmatpush1.bf16.msra.mxu0 0
    %1048 = vmatprep.subr.bf16.mxu0 0
    %1049 = vmatpush1.bf16.msra.mxu0 0
    %1050 = vmatprep.subr.bf16.mxu0 0
    %1051 = vmatpush1.bf16.msra.mxu0 0
    %1052 = vmatprep.subr.bf16.mxu0 0
    %1053 = vmatpush1.bf16.msra.mxu0 0
    %1054 = vmatprep.subr.bf16.mxu0 0
    %1055 = vmatpush1.bf16.msra.mxu0 0
    %1056 = vmatprep.mubr.bf16.mxu0 0
    %1057 = vmatmul.mubr.bf16.gmra.mrb[0].mxu0 %v1022
    %v1058 = vpop.f32.mrb[0].mxu0
    %v1059 = vadd.f32 %v996, %v1058
    %v1060 = vpop.f32.mrb[0].mxu0
    %v1061 = vpop.f32.mrb[0].mxu0
    %v1062 = vpop.f32.mrb[0].mxu0
    %1063 = vdwg.mxu0
    %v1064 = vadd.f32 %v886, %v1059
    %v1065 = vmax.f32 %v1064, 0.0
    %v1066 = vld [vmem:[#allocation13 + $0x1c0] sm:$0xf]
    %v1067 = vld [vmem:[#allocation13 + $0x1c4] sm:$0xf]
    %v1068 = vld [vmem:[#allocation13 + $0x1c8] sm:$0xf]
    %v1069 = vld [vmem:[#allocation13 + $0x1cc] sm:$0xf]
    %v1070 = vld [vmem:[#allocation13 + $0x1d0] sm:$0xf]
    %v1071 = vld [vmem:[#allocation13 + $0x1d4] sm:$0xf]
    %v1072 = vld [vmem:[#allocation13 + $0x1d8] sm:$0xf]
    %v1073 = vld [vmem:[#allocation13 + $0x1dc] sm:$0xf]
    %v1074 = vpack.c.bf16 %v1065, %v1065
    %v1075 = vld [vmem:[%s3 + $0xc] sm:$0x1]
    %v1076 = vlaneseq
    %v1077 = vshrl.u32 %v1076, 7
    %v1078 = vsub.s32 0, %v1077
    %v1079 = vrot.slane %v1075, %v1078
    %v1088 = vunpack.c.l.b16 %v1066
    %v1089 = vunpack.c.l.b16 %v1067
    %v1090 = vunpack.c.l.b16 %v1068
    %v1091 = vunpack.c.l.b16 %v1069
    %v1092 = vunpack.c.l.b16 %v1070
    %v1093 = vunpack.c.l.b16 %v1071
    %v1094 = vunpack.c.l.b16 %v1072
    %v1095 = vunpack.c.l.b16 %v1073
    %v1096 = vpack.c.b16 %v1089, %v1088
    %v1097 = vpack.c.b16 %v1091, %v1090
    %v1098 = vpack.c.b16 %v1093, %v1092
    %v1099 = vpack.c.b16 %v1095, %v1094
    %v1105 = vsel %vm380, %v1074, 0
    %1107 = vmatprep.subr.bf16.mxu0 0
    %1108 = vmatpush1.bf16.msra.mxu0 %v1096
    %1109 = vmatprep.subr.bf16.mxu0 0
    %1110 = vmatpush1.bf16.msra.mxu0 %v1097
    %1111 = vmatprep.subr.bf16.mxu0 0
    %1112 = vmatpush1.bf16.msra.mxu0 %v1098
    %1113 = vmatprep.subr.bf16.mxu0 0
    %1114 = vmatpush1.bf16.msra.mxu0 %v1099
    %1115 = vmatprep.subr.bf16.mxu0 0
    %1116 = vmatpush1.bf16.msra.mxu0 0
    %1117 = vmatprep.subr.bf16.mxu0 0
    %1118 = vmatpush1.bf16.msra.mxu0 0
    %1119 = vmatprep.subr.bf16.mxu0 0
    %1120 = vmatpush1.bf16.msra.mxu0 0
    %1121 = vmatprep.subr.bf16.mxu0 0
    %1122 = vmatpush1.bf16.msra.mxu0 0
    %1123 = vmatprep.subr.bf16.mxu0 0
    %1124 = vmatpush1.bf16.msra.mxu0 0
    %1125 = vmatprep.subr.bf16.mxu0 0
    %1126 = vmatpush1.bf16.msra.mxu0 0
    %1127 = vmatprep.subr.bf16.mxu0 0
    %1128 = vmatpush1.bf16.msra.mxu0 0
    %1129 = vmatprep.subr.bf16.mxu0 0
    %1130 = vmatpush1.bf16.msra.mxu0 0
    %1131 = vmatprep.subr.bf16.mxu0 0
    %1132 = vmatpush1.bf16.msra.mxu0 0
    %1133 = vmatprep.subr.bf16.mxu0 0
    %1134 = vmatpush1.bf16.msra.mxu0 0
    %1135 = vmatprep.subr.bf16.mxu0 0
    %1136 = vmatpush1.bf16.msra.mxu0 0
    %1137 = vmatprep.subr.bf16.mxu0 0
    %1138 = vmatpush1.bf16.msra.mxu0 0
    %1139 = vmatprep.mubr.bf16.mxu0 0
    %1140 = vmatmul.mubr.bf16.gmra.mrb[0].mxu0 %v1105
    %v1141 = vpop.f32.mrb[0].mxu0
    %v1142 = vadd.f32 %v1079, %v1141
    %v1143 = vpop.f32.mrb[0].mxu0
    %v1144 = vpop.f32.mrb[0].mxu0
    %v1145 = vpop.f32.mrb[0].mxu0
    %1146 = vdwg.mxu0
    %v1147 = vtanh.pop %v1142
    %v1148 = vld [vmem:[#allocation13 + $0x1e0] sm:$0xf]
    %v1149 = vld [vmem:[#allocation13 + $0x1e4] sm:$0xf]
    %v1150 = vld [vmem:[#allocation13 + $0x1e8] sm:$0xf]
    %v1151 = vld [vmem:[#allocation13 + $0x1ec] sm:$0xf]
    %v1152 = vld [vmem:[#allocation13 + $0x1f0] sm:$0xf]
    %v1153 = vld [vmem:[#allocation13 + $0x1f4] sm:$0xf]
    %v1154 = vld [vmem:[#allocation13 + $0x1f8] sm:$0xf]
    %v1155 = vld [vmem:[#allocation13 + $0x1fc] sm:$0xf]
    %v1156 = vpack.c.bf16 %v1147, %v1147
    %v1157 = vld [vmem:[%s3 + $0xd] sm:$0x1]
    %v1158 = vlaneseq
    %v1159 = vshrl.u32 %v1158, 7
    %v1160 = vsub.s32 0, %v1159
    %v1161 = vrot.slane %v1157, %v1160
    %v1170 = vunpack.c.l.b16 %v1148
    %v1171 = vunpack.c.l.b16 %v1149
    %v1172 = vunpack.c.l.b16 %v1150
    %v1173 = vunpack.c.l.b16 %v1151
    %v1174 = vunpack.c.l.b16 %v1152
    %v1175 = vunpack.c.l.b16 %v1153
    %v1176 = vunpack.c.l.b16 %v1154
    %v1177 = vunpack.c.l.b16 %v1155
    %v1178 = vpack.c.b16 %v1171, %v1170
    %v1179 = vpack.c.b16 %v1173, %v1172
    %v1180 = vpack.c.b16 %v1175, %v1174
    %v1181 = vpack.c.b16 %v1177, %v1176
    %v1187 = vsel %vm380, %v1156, 0
    %1189 = vmatprep.subr.bf16.mxu0 0
    %1190 = vmatpush1.bf16.msra.mxu0 %v1178
    %1191 = vmatprep.subr.bf16.mxu0 0
    %1192 = vmatpush1.bf16.msra.mxu0 %v1179
    %1193 = vmatprep.subr.bf16.mxu0 0
    %1194 = vmatpush1.bf16.msra.mxu0 %v1180
    %1195 = vmatprep.subr.bf16.mxu0 0
    %1196 = vmatpush1.bf16.msra.mxu0 %v1181
    %1197 = vmatprep.subr.bf16.mxu0 0
    %1198 = vmatpush1.bf16.msra.mxu0 0
    %1199 = vmatprep.subr.bf16.mxu0 0
    %1200 = vmatpush1.bf16.msra.mxu0 0
    %1201 = vmatprep.subr.bf16.mxu0 0
    %1202 = vmatpush1.bf16.msra.mxu0 0
    %1203 = vmatprep.subr.bf16.mxu0 0
    %1204 = vmatpush1.bf16.msra.mxu0 0
    %1205 = vmatprep.subr.bf16.mxu0 0
    %1206 = vmatpush1.bf16.msra.mxu0 0
    %1207 = vmatprep.subr.bf16.mxu0 0
    %1208 = vmatpush1.bf16.msra.mxu0 0
    %1209 = vmatprep.subr.bf16.mxu0 0
    %1210 = vmatpush1.bf16.msra.mxu0 0
    %1211 = vmatprep.subr.bf16.mxu0 0
    %1212 = vmatpush1.bf16.msra.mxu0 0
    %1213 = vmatprep.subr.bf16.mxu0 0
    %1214 = vmatpush1.bf16.msra.mxu0 0
    %1215 = vmatprep.subr.bf16.mxu0 0
    %1216 = vmatpush1.bf16.msra.mxu0 0
    %1217 = vmatprep.subr.bf16.mxu0 0
    %1218 = vmatpush1.bf16.msra.mxu0 0
    %1219 = vmatprep.subr.bf16.mxu0 0
    %1220 = vmatpush1.bf16.msra.mxu0 0
    %1221 = vmatprep.mubr.bf16.mxu0 0
    %1222 = vmatmul.mubr.bf16.gmra.mrb[0].mxu0 %v1187
    %v1223 = vpop.f32.mrb[0].mxu0
    %v1224 = vadd.f32 %v1161, %v1223
    %v1225 = vpop.f32.mrb[0].mxu0
    %v1226 = vpop.f32.mrb[0].mxu0
    %v1227 = vpop.f32.mrb[0].mxu0
    %1228 = vdwg.mxu0
    %v1229 = vstv %s52
    %v1230 = vmul.f32 %v767, %v1229
    %v1231 = vmax.f32 %v1230, 0.0
    %v1232 = vld [vmem:[#allocation13 + $0x190] sm:$0xf]
    %v1233 = vld [vmem:[#allocation13 + $0x194] sm:$0xf]
    %v1234 = vld [vmem:[#allocation13 + $0x198] sm:$0xf]
    %v1235 = vld [vmem:[#allocation13 + $0x19c] sm:$0xf]
    %v1236 = vld [vmem:[#allocation13 + $0x1a0] sm:$0xf]
    %v1237 = vld [vmem:[#allocation13 + $0x1a4] sm:$0xf]
    %v1238 = vld [vmem:[#allocation13 + $0x1a8] sm:$0xf]
    %v1239 = vld [vmem:[#allocation13 + $0x1ac] sm:$0xf]
    %v1240 = vpack.c.bf16 %v1231, %v1231
    %v1241 = vld [vmem:[%s3 + $0xa] sm:$0x1]
    %v1242 = vlaneseq
    %v1243 = vshrl.u32 %v1242, 7
    %v1244 = vsub.s32 0, %v1243
    %v1245 = vrot.slane %v1241, %v1244
    %v1254 = vunpack.c.l.b16 %v1232
    %v1255 = vunpack.c.l.b16 %v1233
    %v1256 = vunpack.c.l.b16 %v1234
    %v1257 = vunpack.c.l.b16 %v1235
    %v1258 = vunpack.c.l.b16 %v1236
    %v1259 = vunpack.c.l.b16 %v1237
    %v1260 = vunpack.c.l.b16 %v1238
    %v1261 = vunpack.c.l.b16 %v1239
    %v1262 = vpack.c.b16 %v1255, %v1254
    %v1263 = vpack.c.b16 %v1257, %v1256
    %v1264 = vpack.c.b16 %v1259, %v1258
    %v1265 = vpack.c.b16 %v1261, %v1260
    %v1271 = vsel %vm380, %v1240, 0
    %1273 = vmatprep.subr.bf16.mxu0 0
    %1274 = vmatpush1.bf16.msra.mxu0 %v1262
    %1275 = vmatprep.subr.bf16.mxu0 0
    %1276 = vmatpush1.bf16.msra.mxu0 %v1263
    %1277 = vmatprep.subr.bf16.mxu0 0
    %1278 = vmatpush1.bf16.msra.mxu0 %v1264
    %1279 = vmatprep.subr.bf16.mxu0 0
    %1280 = vmatpush1.bf16.msra.mxu0 %v1265
    %1281 = vmatprep.subr.bf16.mxu0 0
    %1282 = vmatpush1.bf16.msra.mxu0 0
    %1283 = vmatprep.subr.bf16.mxu0 0
    %1284 = vmatpush1.bf16.msra.mxu0 0
    %1285 = vmatprep.subr.bf16.mxu0 0
    %1286 = vmatpush1.bf16.msra.mxu0 0
    %1287 = vmatprep.subr.bf16.mxu0 0
    %1288 = vmatpush1.bf16.msra.mxu0 0
    %1289 = vmatprep.subr.bf16.mxu0 0
    %1290 = vmatpush1.bf16.msra.mxu0 0
    %1291 = vmatprep.subr.bf16.mxu0 0
    %1292 = vmatpush1.bf16.msra.mxu0 0
    %1293 = vmatprep.subr.bf16.mxu0 0
    %1294 = vmatpush1.bf16.msra.mxu0 0
    %1295 = vmatprep.subr.bf16.mxu0 0
    %1296 = vmatpush1.bf16.msra.mxu0 0
    %1297 = vmatprep.subr.bf16.mxu0 0
    %1298 = vmatpush1.bf16.msra.mxu0 0
    %1299 = vmatprep.subr.bf16.mxu0 0
    %1300 = vmatpush1.bf16.msra.mxu0 0
    %1301 = vmatprep.subr.bf16.mxu0 0
    %1302 = vmatpush1.bf16.msra.mxu0 0
    %1303 = vmatprep.subr.bf16.mxu0 0
    %1304 = vmatpush1.bf16.msra.mxu0 0
    %1305 = vmatprep.mubr.bf16.mxu0 0
    %1306 = vmatmul.mubr.bf16.gmra.mrb[0].mxu0 %v1271
    %v1307 = vpop.f32.mrb[0].mxu0
    %v1308 = vadd.f32 %v1245, %v1307
    %v1309 = vpop.f32.mrb[0].mxu0
    %v1310 = vpop.f32.mrb[0].mxu0
    %v1311 = vpop.f32.mrb[0].mxu0
    %1312 = vdwg.mxu0
    %v1313 = vmax.f32 %v1308, 0.0
    %v1314 = vld [vmem:[#allocation13 + $0x1b0] sm:$0xf]
    %v1315 = vld [vmem:[#allocation13 + $0x1b4] sm:$0xf]
    %v1316 = vld [vmem:[#allocation13 + $0x1b8] sm:$0xf]
    %v1317 = vld [vmem:[#allocation13 + $0x1bc] sm:$0xf]
    %v1318 = vpack.c.bf16 %v1313, %v1313
    %v1323 = vunpack.c.l.b16 %v1314
    %v1324 = vunpack.c.l.b16 %v1315
    %v1325 = vunpack.c.l.b16 %v1316
    %v1326 = vunpack.c.l.b16 %v1317
    %v1327 = vpack.c.b16 %v1324, %v1323
    %v1328 = vpack.c.b16 %v1326, %v1325
    %v1332 = vsel %vm973, %v1318, 0
    %1334 = vmatprep.subr.bf16.mxu0 0
    %1335 = vmatpush1.bf16.msra.mxu0 %v1327
    %1336 = vmatprep.subr.bf16.mxu0 0
    %1337 = vmatpush1.bf16.msra.mxu0 %v1328
    %1338 = vmatprep.subr.bf16.mxu0 0
    %1339 = vmatpush1.bf16.msra.mxu0 0
    %1340 = vmatprep.subr.bf16.mxu0 0
    %1341 = vmatpush1.bf16.msra.mxu0 0
    %1342 = vmatprep.subr.bf16.mxu0 0
    %1343 = vmatpush1.bf16.msra.mxu0 0
    %1344 = vmatprep.subr.bf16.mxu0 0
    %1345 = vmatpush1.bf16.msra.mxu0 0
    %1346 = vmatprep.subr.bf16.mxu0 0
    %1347 = vmatpush1.bf16.msra.mxu0 0
    %1348 = vmatprep.subr.bf16.mxu0 0
    %1349 = vmatpush1.bf16.msra.mxu0 0
    %1350 = vmatprep.subr.bf16.mxu0 0
    %1351 = vmatpush1.bf16.msra.mxu0 0
    %1352 = vmatprep.subr.bf16.mxu0 0
    %1353 = vmatpush1.bf16.msra.mxu0 0
    %1354 = vmatprep.subr.bf16.mxu0 0
    %1355 = vmatpush1.bf16.msra.mxu0 0
    %1356 = vmatprep.subr.bf16.mxu0 0
    %1357 = vmatpush1.bf16.msra.mxu0 0
    %1358 = vmatprep.subr.bf16.mxu0 0
    %1359 = vmatpush1.bf16.msra.mxu0 0
    %1360 = vmatprep.subr.bf16.mxu0 0
    %1361 = vmatpush1.bf16.msra.mxu0 0
    %1362 = vmatprep.subr.bf16.mxu0 0
    %1363 = vmatpush1.bf16.msra.mxu0 0
    %1364 = vmatprep.subr.bf16.mxu0 0
    %1365 = vmatpush1.bf16.msra.mxu0 0
    %1366 = vmatprep.mubr.bf16.mxu0 0
    %1367 = vmatmul.mubr.bf16.gmra.mrb[0].mxu0 %v1332
    %v1368 = vpop.f32.mrb[0].mxu0
    %v1369 = vadd.f32 0.0, %v1368
    %v1370 = vpop.f32.mrb[0].mxu0
    %v1371 = vpop.f32.mrb[0].mxu0
    %v1372 = vpop.f32.mrb[0].mxu0
    %1373 = vdwg.mxu0
    %v1374 = vadd.f32 %v1224, %v1369
    %v1375 = vld [vmem:[%s3 + $0xb] sm:$0x1]
    %v1376 = vlaneseq
    %v1377 = vshrl.u32 %v1376, 7
    %v1378 = vsub.s32 0, %v1377
    %v1379 = vrot.slane %v1375, %v1378
    %v1380 = vadd.f32 %v1374, %v1379
    %v1381 = vmax.f32 %v1380, 0.0
    %v1382 = vld [vmem:[#allocation13 + $0x200] sm:$0xf]
    %v1383 = vld [vmem:[#allocation13 + $0x204] sm:$0xf]
    %v1384 = vld [vmem:[#allocation13 + $0x208] sm:$0xf]
    %v1385 = vld [vmem:[#allocation13 + $0x20c] sm:$0xf]
    %v1386 = vld [vmem:[#allocation13 + $0x210] sm:$0xf]
    %v1387 = vld [vmem:[#allocation13 + $0x214] sm:$0xf]
    %v1388 = vld [vmem:[#allocation13 + $0x218] sm:$0xf]
    %v1389 = vld [vmem:[#allocation13 + $0x21c] sm:$0xf]
    %v1390 = vpack.c.bf16 %v1381, %v1381
    %v1391 = vld [vmem:[%s3 + $0xe] sm:$0x1]
    %v1392 = vlaneseq
    %v1393 = vshrl.u32 %v1392, 7
    %v1394 = vsub.s32 0, %v1393
    %v1395 = vrot.slane %v1391, %v1394
    %v1404 = vunpack.c.l.b16 %v1382
    %v1405 = vunpack.c.l.b16 %v1383
    %v1406 = vunpack.c.l.b16 %v1384
    %v1407 = vunpack.c.l.b16 %v1385
    %v1408 = vunpack.c.l.b16 %v1386
    %v1409 = vunpack.c.l.b16 %v1387
    %v1410 = vunpack.c.l.b16 %v1388
    %v1411 = vunpack.c.l.b16 %v1389
    %v1412 = vpack.c.b16 %v1405, %v1404
    %v1413 = vpack.c.b16 %v1407, %v1406
    %v1414 = vpack.c.b16 %v1409, %v1408
    %v1415 = vpack.c.b16 %v1411, %v1410
    %v1421 = vsel %vm380, %v1390, 0
    %1423 = vmatprep.subr.bf16.mxu0 0
    %1424 = vmatpush1.bf16.msra.mxu0 %v1412
    %1425 = vmatprep.subr.bf16.mxu0 0
    %1426 = vmatpush1.bf16.msra.mxu0 %v1413
    %1427 = vmatprep.subr.bf16.mxu0 0
    %1428 = vmatpush1.bf16.msra.mxu0 %v1414
    %1429 = vmatprep.subr.bf16.mxu0 0
    %1430 = vmatpush1.bf16.msra.mxu0 %v1415
    %1431 = vmatprep.subr.bf16.mxu0 0
    %1432 = vmatpush1.bf16.msra.mxu0 0
    %1433 = vmatprep.subr.bf16.mxu0 0
    %1434 = vmatpush1.bf16.msra.mxu0 0
    %1435 = vmatprep.subr.bf16.mxu0 0
    %1436 = vmatpush1.bf16.msra.mxu0 0
    %1437 = vmatprep.subr.bf16.mxu0 0
    %1438 = vmatpush1.bf16.msra.mxu0 0
    %1439 = vmatprep.subr.bf16.mxu0 0
    %1440 = vmatpush1.bf16.msra.mxu0 0
    %1441 = vmatprep.subr.bf16.mxu0 0
    %1442 = vmatpush1.bf16.msra.mxu0 0
    %1443 = vmatprep.subr.bf16.mxu0 0
    %1444 = vmatpush1.bf16.msra.mxu0 0
    %1445 = vmatprep.subr.bf16.mxu0 0
    %1446 = vmatpush1.bf16.msra.mxu0 0
    %1447 = vmatprep.subr.bf16.mxu0 0
    %1448 = vmatpush1.bf16.msra.mxu0 0
    %1449 = vmatprep.subr.bf16.mxu0 0
    %1450 = vmatpush1.bf16.msra.mxu0 0
    %1451 = vmatprep.subr.bf16.mxu0 0
    %1452 = vmatpush1.bf16.msra.mxu0 0
    %1453 = vmatprep.subr.bf16.mxu0 0
    %1454 = vmatpush1.bf16.msra.mxu0 0
    %1455 = vmatprep.mubr.bf16.mxu0 0
    %1456 = vmatmul.mubr.bf16.gmra.mrb[0].mxu0 %v1421
    %v1457 = vpop.f32.mrb[0].mxu0
    %v1458 = vadd.f32 %v1395, %v1457
    %v1459 = vpop.f32.mrb[0].mxu0
    %v1460 = vpop.f32.mrb[0].mxu0
    %v1461 = vpop.f32.mrb[0].mxu0
    %1462 = vdwg.mxu0
    %v1463 = vtanh.pop %v1458
    %v1464 = vld [vmem:[#allocation13 + $0x220] sm:$0xf]
    %v1465 = vld [vmem:[#allocation13 + $0x224] sm:$0xf]
    %v1466 = vld [vmem:[#allocation13 + $0x228] sm:$0xf]
    %v1467 = vld [vmem:[#allocation13 + $0x22c] sm:$0xf]
    %v1468 = vld [vmem:[#allocation13 + $0x230] sm:$0xf]
    %v1469 = vld [vmem:[#allocation13 + $0x234] sm:$0xf]
    %v1470 = vld [vmem:[#allocation13 + $0x238] sm:$0xf]
    %v1471 = vld [vmem:[#allocation13 + $0x23c] sm:$0xf]
    %v1472 = vpack.c.bf16 %v1463, %v1463
    %v1473 = vld [vmem:[%s3 + $0xf] sm:$0x1]
    %v1474 = vlaneseq
    %v1475 = vshrl.u32 %v1474, 7
    %v1476 = vsub.s32 0, %v1475
    %v1477 = vrot.slane %v1473, %v1476
    %v1486 = vunpack.c.l.b16 %v1464
    %v1487 = vunpack.c.l.b16 %v1465
    %v1488 = vunpack.c.l.b16 %v1466
    %v1489 = vunpack.c.l.b16 %v1467
    %v1490 = vunpack.c.l.b16 %v1468
    %v1491 = vunpack.c.l.b16 %v1469
    %v1492 = vunpack.c.l.b16 %v1470
    %v1493 = vunpack.c.l.b16 %v1471
    %v1494 = vpack.c.b16 %v1487, %v1486
    %v1495 = vpack.c.b16 %v1489, %v1488
    %v1496 = vpack.c.b16 %v1491, %v1490
    %v1497 = vpack.c.b16 %v1493, %v1492
    %v1503 = vsel %vm380, %v1472, 0
    %1505 = vmatprep.subr.bf16.mxu0 0
    %1506 = vmatpush1.bf16.msra.mxu0 %v1494
    %1507 = vmatprep.subr.bf16.mxu0 0
    %1508 = vmatpush1.bf16.msra.mxu0 %v1495
    %1509 = vmatprep.subr.bf16.mxu0 0
    %1510 = vmatpush1.bf16.msra.mxu0 %v1496
    %1511 = vmatprep.subr.bf16.mxu0 0
    %1512 = vmatpush1.bf16.msra.mxu0 %v1497
    %1513 = vmatprep.subr.bf16.mxu0 0
    %1514 = vmatpush1.bf16.msra.mxu0 0
    %1515 = vmatprep.subr.bf16.mxu0 0
    %1516 = vmatpush1.bf16.msra.mxu0 0
    %1517 = vmatprep.subr.bf16.mxu0 0
    %1518 = vmatpush1.bf16.msra.mxu0 0
    %1519 = vmatprep.subr.bf16.mxu0 0
    %1520 = vmatpush1.bf16.msra.mxu0 0
    %1521 = vmatprep.subr.bf16.mxu0 0
    %1522 = vmatpush1.bf16.msra.mxu0 0
    %1523 = vmatprep.subr.bf16.mxu0 0
    %1524 = vmatpush1.bf16.msra.mxu0 0
    %1525 = vmatprep.subr.bf16.mxu0 0
    %1526 = vmatpush1.bf16.msra.mxu0 0
    %1527 = vmatprep.subr.bf16.mxu0 0
    %1528 = vmatpush1.bf16.msra.mxu0 0
    %1529 = vmatprep.subr.bf16.mxu0 0
    %1530 = vmatpush1.bf16.msra.mxu0 0
    %1531 = vmatprep.subr.bf16.mxu0 0
    %1532 = vmatpush1.bf16.msra.mxu0 0
    %1533 = vmatprep.subr.bf16.mxu0 0
    %1534 = vmatpush1.bf16.msra.mxu0 0
    %1535 = vmatprep.subr.bf16.mxu0 0
    %1536 = vmatpush1.bf16.msra.mxu0 0
    %1537 = vmatprep.mubr.bf16.mxu0 0
    %1538 = vmatmul.mubr.bf16.gmra.mrb[0].mxu0 %v1503
    %v1539 = vpop.f32.mrb[0].mxu0
    %v1540 = vadd.f32 %v1477, %v1539
    %v1541 = vpop.f32.mrb[0].mxu0
    %v1542 = vpop.f32.mrb[0].mxu0
    %v1543 = vpop.f32.mrb[0].mxu0
    %1544 = vdwg.mxu0
    %1546 = vset.pattern.permute.xlu0 0
    %1547 = vperm.xlu0 %1546, %v1540
    %v1548 = vpop.permute.xlu0 %1547
    %v1550 = vsel %vm380, %v1381, %v1548
    %1551 = vst [vmem:[%s4] sm:$0x3] %v1550
    // Predicated region
    $region26: #{pnn_forward.1} parent=1 // pred_check
      _
    $region27: #{pnn_forward.1} parent=1 // pred_check_branch
      %1553 = sbr.rel (0) target = $region29
    $region28: #{pnn_forward.1} parent=1 // pred_region
      _
    $region29: #{pnn_forward.1} parent=1 // pred_fallthru
      _
    // Predicated region
    $region30: #{pnn_forward.1} parent=1 // pred_check
      _
    $region31: #{pnn_forward.1} parent=1 // pred_check_branch
      %1555 = sbr.rel (0) target = $region33
    $region32: #{pnn_forward.1} parent=1 // pred_region
      _
    $region33: #{pnn_forward.1} parent=1 // pred_fallthru
      _
    %1556 = vsyncpa [#allocation11], 1
    %1557 = vsyncpa [#allocation12], 1

</llo_original>
